<compile_context>
chip_gen: v7x
topology: tpu7x:2x2x1
jax: 0.10.0
libtpu: 0.0.40
codegen_flags: <defaults>
</compile_context>

<pallas_src>
import jax
import jax.numpy as jnp
from jax import lax
from jax.experimental import pallas as pl
from jax.experimental.pallas import tpu as pltpu


def _lstm_block_kernel(g_ref, x_ref, wh_hbm, o_ref, wh_scr, h_scr, c_scr, sem):
    """One grid step == TU consecutive LSTM time steps for one batch block.

    g_ref : (TU, NB, 4H) bf16  precomputed x_t @ W_ih^T + (b_ih + b_hh)
    x_ref : (TU, NB, F)  f32   raw frames (residual path only)
    wh_hbm: (H, 4H)      bf16  recurrent weight, left in HBM (pl.ANY)
    o_ref : (TU, NB, H)        output block (h_t + x_t)
    wh_scr: (H, 4H) bf16 VMEM  single resident copy of W_hh
    h_scr : (NB, H) f32  VMEM  hidden state carried across time-grid steps
    c_scr : (NB, H) f32  VMEM  cell   state carried across time-grid steps
    sem   : DMA semaphore for the one-shot weight copy
    """
    tb = pl.program_id(1)  # time-block index (innermost, "arbitrary")

    @pl.when(tb == 0)
    def _():
        # Single resident bf16 copy of W_hh (no double-buffered weight
        # pipeline).  Start the DMA, overlap it with the h/c zero-init, then
        # wait right before first use.  With NB=64..128 there is usually one
        # batch block per core, so this runs once per TensorCore in practice.
        cp = pltpu.make_async_copy(wh_hbm, wh_scr, sem)
        cp.start()
        h_scr[...] = jnp.zeros_like(h_scr)
        c_scr[...] = jnp.zeros_like(c_scr)
        cp.wait()

    hdim = h_scr.shape[-1]

    def step(i, carry):
        h_prev, c_prev = carry
        # Cast the carried f32 state once per step; all elementwise gate math
        # stays in f32 (v5e VPU has no bf16 ALUs), only the MXU operands are
        # bf16 with f32 accumulation.
        h_bf = h_prev.astype(jnp.bfloat16)

        def gate_pre(g_idx):
            # One (NB, H) x (H, H) dot per gate against a W_hh column chunk,
            # consumed immediately -> bounds live vregs to ~NB x H and lets
            # the EUP/VPU of one gate overlap the next gate's MXU pushes.
            lo = g_idx * hdim
            hi = lo + hdim
            rec = jnp.dot(h_bf, wh_scr[:, lo:hi],
                          preferred_element_type=jnp.float32)
            return rec + g_ref[i, :, lo:hi].astype(jnp.float32)

        # PyTorch nn.LSTM gate ordering: input, forget, cell(g), output.
        i_g = jax.nn.sigmoid(gate_pre(0))
        f_g = jax.nn.sigmoid(gate_pre(1))
        g_g = jnp.tanh(gate_pre(2))
        o_g = jax.nn.sigmoid(gate_pre(3))

        c_new = f_g * c_prev + i_g * g_g
        h_new = o_g * jnp.tanh(c_new)

        # residual: hidden_size == feature size -> output = h_t + x_t
        o_ref[i] = (h_new + x_ref[i]).astype(o_ref.dtype)
        return h_new, c_new

    h_fin, c_fin = lax.fori_loop(
        0, g_ref.shape[0], step, (h_scr[...], c_scr[...]), unroll=2)
    h_scr[...] = h_fin
    c_scr[...] = c_fin


def prepare_temporal_encoder_params(w_ih, w_hh, b_ih, b_hh):
    """One-time (outside the jitted forward) transpose + bf16 cast of weights.

    Avoids re-materializing the (H, 4H) transpose/cast on every call.
    w_ih, w_hh: (4H, F) / (4H, H) as in torch nn.LSTM.
    """
    w_ih_t = jnp.transpose(w_ih, (1, 0)).astype(jnp.bfloat16)   # (F, 4H)
    w_hh_t = jnp.transpose(w_hh, (1, 0)).astype(jnp.bfloat16)   # (H, 4H)
    bias = (b_ih + b_hh).astype(jnp.float32)                    # (4H,)
    return w_ih_t, w_hh_t, bias


def _pick_vmem_limit_bytes():
    """min(96 MiB, 3/4 physical VMEM): ~48 MiB on v7x, 96 MiB on v5e/v6e."""
    try:
        cap = int(pltpu.get_tpu_info().vmem_capacity_bytes)
    except Exception:
        cap = 128 * 1024 * 1024
    return int(min(96 * 1024 * 1024, (cap * 3) // 4))


def temporal_encoder_pallas(x, w_ih_t, w_hh_t, bias, *, tu=2, nb=64):
    """x: (N, T, F) float32.  Weights from prepare_temporal_encoder_params.

    Returns (N, T, H) with H == F (residual path).
    nb: batch rows per block (MXU M-dim of the recurrent matmul).  64 default;
        128(+) recommended at production batch sizes / on v5e.
    tu: time steps per grid step (amortizes per-grid-step overhead).
    """
    n, t, f = x.shape
    four_h = w_ih_t.shape[1]
    h = four_h // 4
    assert h == f, "residual path requires hidden_size == feature size"

    # time-major, like the PyTorch x.permute(1, 0, 2)
    x_tm = jnp.transpose(x, (1, 0, 2)).astype(jnp.float32)   # (T, N, F)

    # Pad batch to a multiple of nb (full sublanes, unmasked stores) and time
    # to a multiple of tu.  Padded rows/steps are dropped at the end.
    n_pad = (-n) % nb
    t_pad = (-t) % tu
    if n_pad or t_pad:
        x_tm = jnp.pad(x_tm, ((0, t_pad), (0, n_pad), (0, 0)))
    tp, np_ = t + t_pad, n + n_pad

    # (1) Batched input projection for ALL timesteps as one MXU matmul with
    # bf16 operands and f32 accumulation (no HIGHEST-precision multi-pass).
    xg = jnp.dot(x_tm.astype(jnp.bfloat16).reshape(tp * np_, f), w_ih_t,
                 preferred_element_type=jnp.float32)
    # (2) Stream the precomputed gates as bf16 (halves HBM traffic + VMEM for
    # the dominant streamed operand); widened back to f32 inside the kernel.
    xg = (xg + bias).astype(jnp.bfloat16).reshape(tp, np_, four_h)

    grid = (np_ // nb, tp // tu)  # (batch blocks [parallel], time [arbitrary])

    out_tm = pl.pallas_call(
        _lstm_block_kernel,
        out_shape=jax.ShapeDtypeStruct((tp, np_, h), x.dtype),
        grid_spec=pltpu.PrefetchScalarGridSpec(
            num_scalar_prefetch=0,
            grid=grid,
            in_specs=[
                # precomputed bf16 gate blocks, streamed (TU, NB, 4H)
                pl.BlockSpec((tu, nb, four_h), lambda bb, tb: (tb, bb, 0)),
                # raw f32 frames for the residual, streamed (TU, NB, F)
                pl.BlockSpec((tu, nb, f), lambda bb, tb: (tb, bb, 0)),
                # recurrent weight: raw HBM ref, manual one-shot DMA in-kernel
                pl.BlockSpec(memory_space=pl.ANY),
            ],
            out_specs=pl.BlockSpec((tu, nb, h), lambda bb, tb: (tb, bb, 0)),
            scratch_shapes=[
                pltpu.VMEM((h, four_h), jnp.bfloat16),   # resident W_hh (bf16)
                pltpu.VMEM((nb, h), jnp.float32),        # h state
                pltpu.VMEM((nb, h), jnp.float32),        # c state
                pltpu.SemaphoreType.DMA(()),             # weight-copy sem
            ],
        ),
        compiler_params=pltpu.CompilerParams(
            # Batch blocks are independent LSTMs -> "parallel" (both v7x TCs);
            # the time recurrence is inherently sequential -> "arbitrary".
            # NOTE: h/c scratch carried across time steps relies on this exact
            # axis ordering/semantics; do not reorder.
            dimension_semantics=("parallel", "arbitrary"),
            vmem_limit_bytes=_pick_vmem_limit_bytes(),
        ),
    )(xg, x_tm, w_hh_t)
    # TODO(synk): on v7x, W_hh could additionally be quantized to fp8(e4m3)
    # with per-channel scales to halve the resident weight; not done here.

    out_tm = out_tm[:t, :n]                       # drop time/batch padding
    return jnp.transpose(out_tm, (1, 0, 2))       # back to (N, T, H)


def temporal_encoder_ref(x, w_ih, w_hh, b_ih, b_hh, *,
                         mirror_kernel_precision=False):
    """Pure-JAX reference of the PyTorch forward (for validation).

    mirror_kernel_precision=True mirrors the kernel's bf16-operand matmuls and
    the bf16 storage of the precomputed gates, so the kernel recurrence/gate
    logic can be checked with a tight tolerance.
    """
    n, t, f = x.shape
    h = w_hh.shape[1]
    x_tm = jnp.transpose(x, (1, 0, 2)).astype(jnp.float32)    # (T, N, F)
    b = (b_ih + b_hh).astype(jnp.float32)

    if mirror_kernel_precision:
        xg = jnp.einsum("tnf,fg->tng",
                        x_tm.astype(jnp.bfloat16),
                        jnp.transpose(w_ih, (1, 0)).astype(jnp.bfloat16),
                        preferred_element_type=jnp.float32)
        xg = (xg + b).astype(jnp.bfloat16).astype(jnp.float32)
        w_hh_t = jnp.transpose(w_hh, (1, 0)).astype(jnp.bfloat16)

        def rec_dot(h_prev):
            return jnp.dot(h_prev.astype(jnp.bfloat16), w_hh_t,
                           preferred_element_type=jnp.float32)
    else:
        xg = jnp.einsum("tnf,gf->tng", x_tm, w_ih,
                        precision=lax.Precision.HIGHEST) + b

        def rec_dot(h_prev):
            return jnp.dot(h_prev, w_hh.T, precision=lax.Precision.HIGHEST)

    def step(carry, g_x):
        h_prev, c_prev = carry
        gates = g_x + rec_dot(h_prev)
        i_g = jax.nn.sigmoid(gates[:, 0 * h:1 * h])
        f_g = jax.nn.sigmoid(gates[:, 1 * h:2 * h])
        g_g = jnp.tanh(gates[:, 2 * h:3 * h])
        o_g = jax.nn.sigmoid(gates[:, 3 * h:4 * h])
        c_new = f_g * c_prev + i_g * g_g
        h_new = o_g * jnp.tanh(c_new)
        return (h_new, c_new), h_new

    h0 = jnp.zeros((n, h), jnp.float32)
    c0 = jnp.zeros((n, h), jnp.float32)
    _, hs = lax.scan(step, (h0, c0), xg)          # (T, N, H)
    out = hs + x_tm                               # residual (H == F)
    return jnp.transpose(out, (1, 0, 2))


if __name__ == "__main__":
    # Small, TPU-friendly stand-in for the real (2048) feature size.
    # N=72 exercises the batch-padding path (padded to 128 -> two "parallel"
    # batch blocks of NB=64); T=16 with TU=2 -> eight sequential time blocks.
    N, T, F = 72, 16, 128
    H = F  # hidden_size == input feature size (residual path active)

    key = jax.random.PRNGKey(0)
    k_x, k_wih, k_whh, k_bih, k_bhh = jax.random.split(key, 5)

    scale = 1.0 / jnp.sqrt(jnp.float32(H))
    x = jax.random.normal(k_x, (N, T, F), jnp.float32)
    w_ih = jax.random.uniform(k_wih, (4 * H, F), jnp.float32, -scale, scale)
    w_hh = jax.random.uniform(k_whh, (4 * H, H), jnp.float32, -scale, scale)
    b_ih = jax.random.uniform(k_bih, (4 * H,), jnp.float32, -scale, scale)
    b_hh = jax.random.uniform(k_bhh, (4 * H,), jnp.float32, -scale, scale)

    # One-time weight prep outside the jitted forward.
    w_ih_t, w_hh_t, bias = prepare_temporal_encoder_params(
        w_ih, w_hh, b_ih, b_hh)

    out = jax.jit(temporal_encoder_pallas)(x, w_ih_t, w_hh_t, bias)
    out = jax.block_until_ready(out)
    assert out.shape == (N, T, H), out.shape

    # Tight check against a reference that mirrors the kernel's bf16 matmul
    # operands / bf16 gate stream (validates the recurrence & gate logic).
    ref_mirror = temporal_encoder_ref(x, w_ih, w_hh, b_ih, b_hh,
                                      mirror_kernel_precision=True)
    err_mirror = float(jnp.max(jnp.abs(out - ref_mirror)))
    assert err_mirror < 5e-3, f"kernel vs precision-mirrored ref: {err_mirror}"

    # Looser sanity check against the pure-f32 PyTorch-equivalent reference
    # (the only deviation is the bf16 matmul-operand / gate-stream precision).
    ref_f32 = temporal_encoder_ref(x, w_ih, w_hh, b_ih, b_hh,
                                   mirror_kernel_precision=False)
    err_f32 = float(jnp.max(jnp.abs(out - ref_f32)))
    assert err_f32 < 1e-1, f"kernel vs f32 reference: {err_f32}"

    # TODO(synk): add_linear / bidirectional branches are off in the default
    # config and are not implemented in the kernel.
    print("KERNEL_OK")
</pallas_src>

<mosaic_0001>
module attributes {stable_mosaic.version = 11 : i64} {
  func.func @_lstm_block_kernel(%arg0: i32, %arg1: i32, %arg2: memref<2x64x512xbf16, #tpu.memory_space<vmem>>, %arg3: memref<2x64x128xf32, #tpu.memory_space<vmem>>, %arg4: memref<128x512xbf16, #tpu.memory_space<any>>, %arg5: memref<2x64x128xf32, #tpu.memory_space<vmem>>, %arg6: memref<128x512xbf16, #tpu.memory_space<vmem>>, %arg7: memref<64x128xf32, #tpu.memory_space<vmem>>, %arg8: memref<64x128xf32, #tpu.memory_space<vmem>>, %arg9: memref<!tpu.dma_semaphore, #tpu.memory_space<semaphore_mem>>) attributes {dimension_semantics = [#tpu.dimension_semantics<parallel>, #tpu.dimension_semantics<arbitrary>], iteration_bounds = array<i64: 2, 8>, scalar_prefetch = 0 : i64, scratch_operands = 4 : i64, tpu.core_type = #tpu.core_type<tc>, window_params = [{transform_indices = @transform_0, window_bounds = array<i64: 2, 64, 512>}, {transform_indices = @transform_1, window_bounds = array<i64: 2, 64, 128>}, {}, {transform_indices = @transform_3, window_bounds = array<i64: 2, 64, 128>}]} {
    %c0_i32 = arith.constant 0 : i32
    %0 = arith.cmpi eq, %arg1, %c0_i32 : i32
    %1 = arith.extui %0 : i1 to i32
    %c0_i32_0 = arith.constant 0 : i32
    %2 = arith.cmpi ne, %1, %c0_i32_0 : i32
    scf.if %2 {
      tpu.enqueue_dma source(%arg4 : memref<128x512xbf16, #tpu.memory_space<any>>) target(%arg6 : memref<128x512xbf16, #tpu.memory_space<vmem>>) target_semaphore(%arg9 : memref<!tpu.dma_semaphore, #tpu.memory_space<semaphore_mem>>)
      %cst_59 = arith.constant 0.000000e+00 : f32
      %123 = vector.broadcast %cst_59 : f32 to vector<64x128xf32>
      %c0_60 = arith.constant 0 : index
      %c0_61 = arith.constant 0 : index
      %124 = vector.load %arg7[%c0_60, %c0_61] : memref<64x128xf32, #tpu.memory_space<vmem>>, vector<64x128xf32>
      tpu.vector_store %arg7[%c0_60, %c0_61], %123 {strides = array<i32>} : memref<64x128xf32, #tpu.memory_space<vmem>>, vector<64x128xf32>,
      %cst_62 = arith.constant 0.000000e+00 : f32
      %125 = vector.broadcast %cst_62 : f32 to vector<64x128xf32>
      %c0_63 = arith.constant 0 : index
      %c0_64 = arith.constant 0 : index
      %126 = vector.load %arg8[%c0_63, %c0_64] : memref<64x128xf32, #tpu.memory_space<vmem>>, vector<64x128xf32>
      tpu.vector_store %arg8[%c0_63, %c0_64], %125 {strides = array<i32>} : memref<64x128xf32, #tpu.memory_space<vmem>>, vector<64x128xf32>,
      tpu.wait_dma2 semaphore(%arg9 : memref<!tpu.dma_semaphore, #tpu.memory_space<semaphore_mem>>) src(%arg4 : memref<128x512xbf16, #tpu.memory_space<any>>) dst(%arg6 : memref<128x512xbf16, #tpu.memory_space<vmem>>)
    } else {
    }
    %c0 = arith.constant 0 : index
    %c0_1 = arith.constant 0 : index
    %3 = vector.load %arg7[%c0, %c0_1] : memref<64x128xf32, #tpu.memory_space<vmem>>, vector<64x128xf32>
    %c0_2 = arith.constant 0 : index
    %c0_3 = arith.constant 0 : index
    %4 = vector.load %arg8[%c0_2, %c0_3] : memref<64x128xf32, #tpu.memory_space<vmem>>, vector<64x128xf32>
    %c0_i32_4 = arith.constant 0 : i32
    %5 = arith.truncf %3 : vector<64x128xf32> to vector<64x128xbf16>
    %c0_5 = arith.constant 0 : index
    %c0_6 = arith.constant 0 : index
    %6 = vector.load %arg6[%c0_5, %c0_6] : memref<128x512xbf16, #tpu.memory_space<vmem>>, vector<128x128xbf16>
    %cst = arith.constant dense<0.000000e+00> : vector<64x128xf32>
    %7 = tpu.matmul %5, %6, %cst {dimension_numbers = #tpu.dot_dimension_numbers<[1], [0], [0], [1], [0, 0, 1, 1], [], []>} : vector<64x128xbf16>, vector<128x128xbf16>, vector<64x128xf32> -> vector<64x128xf32>
    %8 = arith.index_cast %c0_i32_4 : i32 to index
    %c0_7 = arith.constant 0 : index
    %c0_8 = arith.constant 0 : index
    %9 = vector.load %arg2[%8, %c0_7, %c0_8] : memref<2x64x512xbf16, #tpu.memory_space<vmem>>, vector<1x64x128xbf16>
    %10 = vector.shape_cast %9 : vector<1x64x128xbf16> to vector<64x128xbf16>
    %11 = arith.extf %10 : vector<64x128xbf16> to vector<64x128xf32>
    %12 = arith.addf %7, %11 : vector<64x128xf32>
    %13 = arith.negf %12 : vector<64x128xf32>
    %14 = math.exp %13 : vector<64x128xf32>
    %cst_9 = arith.constant 1.000000e+00 : f32
    %15 = vector.broadcast %cst_9 : f32 to vector<64x128xf32>
    %16 = arith.addf %15, %14 : vector<64x128xf32>
    %17 = arith.divf %15, %16 : vector<64x128xf32>
    %c0_10 = arith.constant 0 : index
    %c128 = arith.constant 128 : index
    %18 = vector.load %arg6[%c0_10, %c128] : memref<128x512xbf16, #tpu.memory_space<vmem>>, vector<128x128xbf16>
    %cst_11 = arith.constant dense<0.000000e+00> : vector<64x128xf32>
    %19 = tpu.matmul %5, %18, %cst_11 {dimension_numbers = #tpu.dot_dimension_numbers<[1], [0], [0], [1], [0, 0, 1, 1], [], []>} : vector<64x128xbf16>, vector<128x128xbf16>, vector<64x128xf32> -> vector<64x128xf32>
    %20 = arith.index_cast %c0_i32_4 : i32 to index
    %c0_12 = arith.constant 0 : index
    %c128_13 = arith.constant 128 : index
    %21 = vector.load %arg2[%20, %c0_12, %c128_13] : memref<2x64x512xbf16, #tpu.memory_space<vmem>>, vector<1x64x128xbf16>
    %22 = vector.shape_cast %21 : vector<1x64x128xbf16> to vector<64x128xbf16>
    %23 = arith.extf %22 : vector<64x128xbf16> to vector<64x128xf32>
    %24 = arith.addf %19, %23 : vector<64x128xf32>
    %25 = arith.negf %24 : vector<64x128xf32>
    %26 = math.exp %25 : vector<64x128xf32>
    %cst_14 = arith.constant 1.000000e+00 : f32
    %27 = vector.broadcast %cst_14 : f32 to vector<64x128xf32>
    %28 = arith.addf %27, %26 : vector<64x128xf32>
    %29 = arith.divf %27, %28 : vector<64x128xf32>
    %c0_15 = arith.constant 0 : index
    %c256 = arith.constant 256 : index
    %30 = vector.load %arg6[%c0_15, %c256] : memref<128x512xbf16, #tpu.memory_space<vmem>>, vector<128x128xbf16>
    %cst_16 = arith.constant dense<0.000000e+00> : vector<64x128xf32>
    %31 = tpu.matmul %5, %30, %cst_16 {dimension_numbers = #tpu.dot_dimension_numbers<[1], [0], [0], [1], [0, 0, 1, 1], [], []>} : vector<64x128xbf16>, vector<128x128xbf16>, vector<64x128xf32> -> vector<64x128xf32>
    %32 = arith.index_cast %c0_i32_4 : i32 to index
    %c0_17 = arith.constant 0 : index
    %c256_18 = arith.constant 256 : index
    %33 = vector.load %arg2[%32, %c0_17, %c256_18] : memref<2x64x512xbf16, #tpu.memory_space<vmem>>, vector<1x64x128xbf16>
    %34 = vector.shape_cast %33 : vector<1x64x128xbf16> to vector<64x128xbf16>
    %35 = arith.extf %34 : vector<64x128xbf16> to vector<64x128xf32>
    %36 = arith.addf %31, %35 : vector<64x128xf32>
    %37 = math.tanh %36 : vector<64x128xf32>
    %c0_19 = arith.constant 0 : index
    %c384 = arith.constant 384 : index
    %38 = vector.load %arg6[%c0_19, %c384] : memref<128x512xbf16, #tpu.memory_space<vmem>>, vector<128x128xbf16>
    %cst_20 = arith.constant dense<0.000000e+00> : vector<64x128xf32>
    %39 = tpu.matmul %5, %38, %cst_20 {dimension_numbers = #tpu.dot_dimension_numbers<[1], [0], [0], [1], [0, 0, 1, 1], [], []>} : vector<64x128xbf16>, vector<128x128xbf16>, vector<64x128xf32> -> vector<64x128xf32>
    %40 = arith.index_cast %c0_i32_4 : i32 to index
    %c0_21 = arith.constant 0 : index
    %c384_22 = arith.constant 384 : index
    %41 = vector.load %arg2[%40, %c0_21, %c384_22] : memref<2x64x512xbf16, #tpu.memory_space<vmem>>, vector<1x64x128xbf16>
    %42 = vector.shape_cast %41 : vector<1x64x128xbf16> to vector<64x128xbf16>
    %43 = arith.extf %42 : vector<64x128xbf16> to vector<64x128xf32>
    %44 = arith.addf %39, %43 : vector<64x128xf32>
    %45 = arith.negf %44 : vector<64x128xf32>
    %46 = math.exp %45 : vector<64x128xf32>
    %cst_23 = arith.constant 1.000000e+00 : f32
    %47 = vector.broadcast %cst_23 : f32 to vector<64x128xf32>
    %48 = arith.addf %47, %46 : vector<64x128xf32>
    %49 = arith.divf %47, %48 : vector<64x128xf32>
    %50 = arith.mulf %29, %4 : vector<64x128xf32>
    %51 = arith.mulf %17, %37 : vector<64x128xf32>
    %52 = arith.addf %50, %51 : vector<64x128xf32>
    %53 = math.tanh %52 : vector<64x128xf32>
    %54 = arith.mulf %49, %53 : vector<64x128xf32>
    %55 = arith.index_cast %c0_i32_4 : i32 to index
    %c0_24 = arith.constant 0 : index
    %c0_25 = arith.constant 0 : index
    %56 = vector.load %arg3[%55, %c0_24, %c0_25] : memref<2x64x128xf32, #tpu.memory_space<vmem>>, vector<1x64x128xf32>
    %57 = vector.shape_cast %56 : vector<1x64x128xf32> to vector<64x128xf32>
    %58 = arith.addf %54, %57 : vector<64x128xf32>
    %59 = arith.index_cast %c0_i32_4 : i32 to index
    %c0_26 = arith.constant 0 : index
    %c0_27 = arith.constant 0 : index
    %60 = vector.load %arg5[%59, %c0_26, %c0_27] : memref<2x64x128xf32, #tpu.memory_space<vmem>>, vector<1x64x128xf32>
    %61 = vector.shape_cast %60 : vector<1x64x128xf32> to vector<64x128xf32>
    %62 = vector.shape_cast %58 : vector<64x128xf32> to vector<1x64x128xf32>
    tpu.vector_store %arg5[%59, %c0_26, %c0_27], %62 {strides = array<i32>} : memref<2x64x128xf32, #tpu.memory_space<vmem>>, vector<1x64x128xf32>,
    %c1_i32 = arith.constant 1 : i32
    %63 = arith.truncf %54 : vector<64x128xf32> to vector<64x128xbf16>
    %c0_28 = arith.constant 0 : index
    %c0_29 = arith.constant 0 : index
    %64 = vector.load %arg6[%c0_28, %c0_29] : memref<128x512xbf16, #tpu.memory_space<vmem>>, vector<128x128xbf16>
    %cst_30 = arith.constant dense<0.000000e+00> : vector<64x128xf32>
    %65 = tpu.matmul %63, %64, %cst_30 {dimension_numbers = #tpu.dot_dimension_numbers<[1], [0], [0], [1], [0, 0, 1, 1], [], []>} : vector<64x128xbf16>, vector<128x128xbf16>, vector<64x128xf32> -> vector<64x128xf32>
    %66 = arith.index_cast %c1_i32 : i32 to index
    %c0_31 = arith.constant 0 : index
    %c0_32 = arith.constant 0 : index
    %67 = vector.load %arg2[%66, %c0_31, %c0_32] : memref<2x64x512xbf16, #tpu.memory_space<vmem>>, vector<1x64x128xbf16>
    %68 = vector.shape_cast %67 : vector<1x64x128xbf16> to vector<64x128xbf16>
    %69 = arith.extf %68 : vector<64x128xbf16> to vector<64x128xf32>
    %70 = arith.addf %65, %69 : vector<64x128xf32>
    %71 = arith.negf %70 : vector<64x128xf32>
    %72 = math.exp %71 : vector<64x128xf32>
    %cst_33 = arith.constant 1.000000e+00 : f32
    %73 = vector.broadcast %cst_33 : f32 to vector<64x128xf32>
    %74 = arith.addf %73, %72 : vector<64x128xf32>
    %75 = arith.divf %73, %74 : vector<64x128xf32>
    %c0_34 = arith.constant 0 : index
    %c128_35 = arith.constant 128 : index
    %76 = vector.load %arg6[%c0_34, %c128_35] : memref<128x512xbf16, #tpu.memory_space<vmem>>, vector<128x128xbf16>
    %cst_36 = arith.constant dense<0.000000e+00> : vector<64x128xf32>
    %77 = tpu.matmul %63, %76, %cst_36 {dimension_numbers = #tpu.dot_dimension_numbers<[1], [0], [0], [1], [0, 0, 1, 1], [], []>} : vector<64x128xbf16>, vector<128x128xbf16>, vector<64x128xf32> -> vector<64x128xf32>
    %78 = arith.index_cast %c1_i32 : i32 to index
    %c0_37 = arith.constant 0 : index
    %c128_38 = arith.constant 128 : index
    %79 = vector.load %arg2[%78, %c0_37, %c128_38] : memref<2x64x512xbf16, #tpu.memory_space<vmem>>, vector<1x64x128xbf16>
    %80 = vector.shape_cast %79 : vector<1x64x128xbf16> to vector<64x128xbf16>
    %81 = arith.extf %80 : vector<64x128xbf16> to vector<64x128xf32>
    %82 = arith.addf %77, %81 : vector<64x128xf32>
    %83 = arith.negf %82 : vector<64x128xf32>
    %84 = math.exp %83 : vector<64x128xf32>
    %cst_39 = arith.constant 1.000000e+00 : f32
    %85 = vector.broadcast %cst_39 : f32 to vector<64x128xf32>
    %86 = arith.addf %85, %84 : vector<64x128xf32>
    %87 = arith.divf %85, %86 : vector<64x128xf32>
    %c0_40 = arith.constant 0 : index
    %c256_41 = arith.constant 256 : index
    %88 = vector.load %arg6[%c0_40, %c256_41] : memref<128x512xbf16, #tpu.memory_space<vmem>>, vector<128x128xbf16>
    %cst_42 = arith.constant dense<0.000000e+00> : vector<64x128xf32>
    %89 = tpu.matmul %63, %88, %cst_42 {dimension_numbers = #tpu.dot_dimension_numbers<[1], [0], [0], [1], [0, 0, 1, 1], [], []>} : vector<64x128xbf16>, vector<128x128xbf16>, vector<64x128xf32> -> vector<64x128xf32>
    %90 = arith.index_cast %c1_i32 : i32 to index
    %c0_43 = arith.constant 0 : index
    %c256_44 = arith.constant 256 : index
    %91 = vector.load %arg2[%90, %c0_43, %c256_44] : memref<2x64x512xbf16, #tpu.memory_space<vmem>>, vector<1x64x128xbf16>
    %92 = vector.shape_cast %91 : vector<1x64x128xbf16> to vector<64x128xbf16>
    %93 = arith.extf %92 : vector<64x128xbf16> to vector<64x128xf32>
    %94 = arith.addf %89, %93 : vector<64x128xf32>
    %95 = math.tanh %94 : vector<64x128xf32>
    %c0_45 = arith.constant 0 : index
    %c384_46 = arith.constant 384 : index
    %96 = vector.load %arg6[%c0_45, %c384_46] : memref<128x512xbf16, #tpu.memory_space<vmem>>, vector<128x128xbf16>
    %cst_47 = arith.constant dense<0.000000e+00> : vector<64x128xf32>
    %97 = tpu.matmul %63, %96, %cst_47 {dimension_numbers = #tpu.dot_dimension_numbers<[1], [0], [0], [1], [0, 0, 1, 1], [], []>} : vector<64x128xbf16>, vector<128x128xbf16>, vector<64x128xf32> -> vector<64x128xf32>
    %98 = arith.index_cast %c1_i32 : i32 to index
    %c0_48 = arith.constant 0 : index
    %c384_49 = arith.constant 384 : index
    %99 = vector.load %arg2[%98, %c0_48, %c384_49] : memref<2x64x512xbf16, #tpu.memory_space<vmem>>, vector<1x64x128xbf16>
    %100 = vector.shape_cast %99 : vector<1x64x128xbf16> to vector<64x128xbf16>
    %101 = arith.extf %100 : vector<64x128xbf16> to vector<64x128xf32>
    %102 = arith.addf %97, %101 : vector<64x128xf32>
    %103 = arith.negf %102 : vector<64x128xf32>
    %104 = math.exp %103 : vector<64x128xf32>
    %cst_50 = arith.constant 1.000000e+00 : f32
    %105 = vector.broadcast %cst_50 : f32 to vector<64x128xf32>
    %106 = arith.addf %105, %104 : vector<64x128xf32>
    %107 = arith.divf %105, %106 : vector<64x128xf32>
    %108 = arith.mulf %87, %52 : vector<64x128xf32>
    %109 = arith.mulf %75, %95 : vector<64x128xf32>
    %110 = arith.addf %108, %109 : vector<64x128xf32>
    %111 = math.tanh %110 : vector<64x128xf32>
    %112 = arith.mulf %107, %111 : vector<64x128xf32>
    %113 = arith.index_cast %c1_i32 : i32 to index
    %c0_51 = arith.constant 0 : index
    %c0_52 = arith.constant 0 : index
    %114 = vector.load %arg3[%113, %c0_51, %c0_52] : memref<2x64x128xf32, #tpu.memory_space<vmem>>, vector<1x64x128xf32>
    %115 = vector.shape_cast %114 : vector<1x64x128xf32> to vector<64x128xf32>
    %116 = arith.addf %112, %115 : vector<64x128xf32>
    %117 = arith.index_cast %c1_i32 : i32 to index
    %c0_53 = arith.constant 0 : index
    %c0_54 = arith.constant 0 : index
    %118 = vector.load %arg5[%117, %c0_53, %c0_54] : memref<2x64x128xf32, #tpu.memory_space<vmem>>, vector<1x64x128xf32>
    %119 = vector.shape_cast %118 : vector<1x64x128xf32> to vector<64x128xf32>
    %120 = vector.shape_cast %116 : vector<64x128xf32> to vector<1x64x128xf32>
    tpu.vector_store %arg5[%117, %c0_53, %c0_54], %120 {strides = array<i32>} : memref<2x64x128xf32, #tpu.memory_space<vmem>>, vector<1x64x128xf32>,
    %c2_i32 = arith.constant 2 : i32
    %c0_55 = arith.constant 0 : index
    %c0_56 = arith.constant 0 : index
    %121 = vector.load %arg7[%c0_55, %c0_56] : memref<64x128xf32, #tpu.memory_space<vmem>>, vector<64x128xf32>
    tpu.vector_store %arg7[%c0_55, %c0_56], %112 {strides = array<i32>} : memref<64x128xf32, #tpu.memory_space<vmem>>, vector<64x128xf32>,
    %c0_57 = arith.constant 0 : index
    %c0_58 = arith.constant 0 : index
    %122 = vector.load %arg8[%c0_57, %c0_58] : memref<64x128xf32, #tpu.memory_space<vmem>>, vector<64x128xf32>
    tpu.vector_store %arg8[%c0_57, %c0_58], %110 {strides = array<i32>} : memref<64x128xf32, #tpu.memory_space<vmem>>, vector<64x128xf32>,
    return
  }
  func.func @transform_0(%arg0: i32, %arg1: i32) -> (i32, i32, i32) {
    %c0_i32 = arith.constant 0 : i32
    %c0_i32_0 = arith.constant 0 : i32
    return %arg1, %arg0, %c0_i32 : i32, i32, i32
  }
  func.func @transform_1(%arg0: i32, %arg1: i32) -> (i32, i32, i32) {
    %c0_i32 = arith.constant 0 : i32
    %c0_i32_0 = arith.constant 0 : i32
    return %arg1, %arg0, %c0_i32 : i32, i32, i32
  }
  func.func @transform_3(%arg0: i32, %arg1: i32) -> (i32, i32, i32) {
    %c0_i32 = arith.constant 0 : i32
    %c0_i32_0 = arith.constant 0 : i32
    return %arg1, %arg0, %c0_i32 : i32, i32, i32
  }
}

</mosaic_0001>

<llo_original>
// kernel: temporal_encoder_pallas.1
$region0: #{temporal_encoder_pallas.1}
  #allocation0 [shape = 'u32[]', space=smem, size = 0x4, offset = 0x4, fixed_abs, tag = 'smem constant byte address 0x4 - core index']
  #allocation1 [shape = 'u32[144,128]{1,0:T(1,128)}', space=vmem, size = 0x12000, scoped, tag = 'internal scratch']
  #allocation2 [shape = 'bf16[128,512]{1,0:T(16,128)(2,1)}', space=vmem, size = 0x20000, scoped, tag = 'scratch operand']
  #allocation3 [shape = 'f32[64,128]{1,0:T(8,128)}', space=vmem, size = 0x8000, scoped, tag = 'scratch operand']
  #allocation4 [shape = 'f32[64,128]{1,0:T(8,128)}', space=vmem, size = 0x8000, scoped, tag = 'scratch operand']
  #allocation5 [shape = 's32[1]{0}', space=sflag, size = 0x4, scoped, tag = 'scratch operand']
  #allocation12 [shape = 's32[]', space=sflag, size = 0x4, offset = 0, fixed_abs, tag = 'sflag constant byte address 0x0 - dummy sync flag']
  #allocation14 [shape = 's32[]', space=sflag, size = 0x4, offset = 0, fixed_abs, tag = 'sflag constant byte address 0x0 - dummy sync flag']
  #allocation16 [shape = 's32[]', space=sflag, size = 0x4, offset = 0, fixed_abs, tag = 'sflag constant byte address 0x0 - dummy sync flag']
  #allocation18 [shape = 's32[]', space=sflag, size = 0x4, offset = 0, fixed_abs, tag = 'sflag constant byte address 0x0 - dummy sync flag']
  %s0 = inlined_call_operand.hbm [shape: bf16[16,128,512], index: 0, kind: input, shape index: {}]
  %s1 = inlined_call_operand.hbm [shape: f32[16,128,128], index: 1, kind: input, shape index: {}]
  %s2 = inlined_call_operand.hbm [shape: bf16[128,512], index: 2, kind: input, shape index: {}]
  %s3 = inlined_call_operand.hbm [shape: f32[16,128,128], index: 3, kind: output, shape index: {}]
  %s4 = sld [smem:[#allocation0]]
  $region53: #{temporal_encoder_pallas.1} parent=0
    _
  %s6 = ssub.s32 1, %s4
  %s7 = scalar_select 0, %s6, %s4
  $region1: #{temporal_encoder_pallas.1} parent=0
    #allocation6 [shape = 'u8[262144]{0}', space=vmem, size = 0x40000, scoped, tag = 'input window, operand 0']
    #allocation7 [shape = 's32[2]{0}', space=sflag, size = 0x8, scoped, tag = 'scoped memory for temporal_encoder_pallas.1']
    #allocation8 [shape = 's32[2]{0}', space=sflag, size = 0x8, scoped, tag = 'scoped memory for temporal_encoder_pallas.1']
    #allocation9 [shape = 'u8[131072]{0}', space=vmem, size = 0x20000, scoped, tag = 'input window, operand 1']
    #allocation10 [shape = 's32[2]{0}', space=sflag, size = 0x8, scoped, tag = 'scoped memory for temporal_encoder_pallas.1']
    #allocation11 [shape = 'u8[131072]{0}', space=vmem, size = 0x20000, scoped, tag = 'output window, operand 0']
    %8 = vsyncpa [#allocation7], 0
    %s9 = scalar_lea.sflag [#allocation7], 1
    %10 = vsyncpa %s9, 0
    %11 = vsyncpa [#allocation10], 0
    %s12 = scalar_lea.sflag [#allocation10], 1
    %13 = vsyncpa %s12, 0
    %14 = vsyncpa [#allocation8], 0
    %s15 = scalar_lea.sflag [#allocation8], 1
    %16 = vsyncpa %s15, 0
    loop: start=0, step=1, limit=18
    $region2: #{temporal_encoder_pallas.1} parent=1 // loop_pre_header
      _
    $region3: #{temporal_encoder_pallas.1} parent=1 // loop_header
      %s18 = sphi 0, %s22
      %p19 = scmp.ge.s32.totalorder %s18, 18
      %s25 = sphi 0, %s37
      %s26 = sphi 0, %s33
      %s27 = sphi 0, %s25
      %s28 = sphi 0, %s26
      %s29 = sphi 0, %s27
      %s30 = sphi 0, %s28
      %s42 = sphi 0, %s44
      %s45 = sphi 0, %s42
      %s46 = sphi 0, %s45
      %s62 = sphi 0, %s46
      %s70 = sphi 0, %s72
      %s73 = sphi 0, %s70
      %s74 = sphi 0, %s73
      %s90 = sphi 0, %s74
      %s98 = sphi 0, %s100
      %s101 = sphi 0, %s98
      %s102 = sphi 0, %s101
      %s118 = sphi 0, %s102
    $region4: #{temporal_encoder_pallas.1} parent=1 // loop_header_branch
      %21 = sbr.rel (%p19) target = $region8
    $region5: #{temporal_encoder_pallas.1} parent=1 // loop_body
      %s23 = ssub.s32 %s18, 1
      %s24 = ssub.s32 %s18, 2
      %s31 = sadd.s32 1, %s26
      %p32 = scmp.ge.s32.totalorder %s31, 8
      %s33 = scalar_select %p32, 0, %s31
      %s34 = sadd.s32 1, %s25
      %s35 = scalar_select %p32, %s34, %s25
      %p36 = scmp.ge.s32.totalorder %s35, 2
      %s37 = scalar_select %p36, 0, %s35
      %s38 = ssub.s32 %s26, %s33
      %s39 = ssub.s32 %s25, %s37
      %s40 = sor.u32 %s38, %s39
      %p41 = scmp.eq.s32.totalorder %s40, 0
      %s43 = sadd.s32 %s42, 1
      %s44 = scalar_select %p41, %s42, %s43
      %p47 = pneg %p41
      %p48 = scmp.eq.s32.totalorder %s18, 15
      %p49 = por %p47, %p48
      %p50 = scmp.ne.s32.totalorder %s42, %s45
      %p51 = scmp.eq.s32.totalorder %s18, 0
      %p52 = por %p50, %p51
      %p53 = scmp.ne.s32.totalorder %s42, %s45
      %p54 = scmp.eq.s32.totalorder %s23, 15
      %p55 = por %p53, %p54
      %p56 = scmp.ne.s32.totalorder %s45, %s46
      %p57 = scmp.eq.s32.totalorder %s23, 0
      %p58 = por %p56, %p57
      %p59 = scmp.ne.s32.totalorder %s45, %s46
      %p60 = scmp.eq.s32.totalorder %s24, 15
      %p61 = por %p59, %p60
      %p63 = scmp.ne.s32.totalorder %s46, %s62
      %p64 = scmp.eq.s32.totalorder %s24, 0
      %p65 = por %p63, %p64
      %s66 = ssub.s32 %s26, %s33
      %s67 = ssub.s32 %s25, %s37
      %s68 = sor.u32 %s66, %s67
      %p69 = scmp.eq.s32.totalorder %s68, 0
      %s71 = sadd.s32 %s70, 1
      %s72 = scalar_select %p69, %s70, %s71
      %p75 = pneg %p69
      %p76 = scmp.eq.s32.totalorder %s18, 15
      %p77 = por %p75, %p76
      %p78 = scmp.ne.s32.totalorder %s70, %s73
      %p79 = scmp.eq.s32.totalorder %s18, 0
      %p80 = por %p78, %p79
      %p81 = scmp.ne.s32.totalorder %s70, %s73
      %p82 = scmp.eq.s32.totalorder %s23, 15
      %p83 = por %p81, %p82
      %p84 = scmp.ne.s32.totalorder %s73, %s74
      %p85 = scmp.eq.s32.totalorder %s23, 0
      %p86 = por %p84, %p85
      %p87 = scmp.ne.s32.totalorder %s73, %s74
      %p88 = scmp.eq.s32.totalorder %s24, 15
      %p89 = por %p87, %p88
      %p91 = scmp.ne.s32.totalorder %s74, %s90
      %p92 = scmp.eq.s32.totalorder %s24, 0
      %p93 = por %p91, %p92
      %s94 = ssub.s32 %s26, %s33
      %s95 = ssub.s32 %s25, %s37
      %s96 = sor.u32 %s94, %s95
      %p97 = scmp.eq.s32.totalorder %s96, 0
      %s99 = sadd.s32 %s98, 1
      %s100 = scalar_select %p97, %s98, %s99
      %p103 = pneg %p97
      %p104 = scmp.eq.s32.totalorder %s18, 15
      %p105 = por %p103, %p104
      %p106 = scmp.ne.s32.totalorder %s98, %s101
      %p107 = scmp.eq.s32.totalorder %s18, 0
      %p108 = por %p106, %p107
      %p109 = scmp.ne.s32.totalorder %s98, %s101
      %p110 = scmp.eq.s32.totalorder %s23, 15
      %p111 = por %p109, %p110
      %p112 = scmp.ne.s32.totalorder %s101, %s102
      %p113 = scmp.eq.s32.totalorder %s23, 0
      %p114 = por %p112, %p113
      %p115 = scmp.ne.s32.totalorder %s101, %s102
      %p116 = scmp.eq.s32.totalorder %s24, 15
      %p117 = por %p115, %p116
      %p119 = scmp.ne.s32.totalorder %s102, %s118
      %p120 = scmp.eq.s32.totalorder %s24, 0
      %p121 = por %p119, %p120
      %p122 = scmp.le.s32.totalorder 1, %s18
      %p123 = scmp.lt.s32.totalorder %s18, 17
      %p124 = pnand %p122, %p123
      %p125 = pneg %p124
      // Predicated region
      $region9: #{temporal_encoder_pallas.1} parent=5 // pred_check
        _
      $region10: #{temporal_encoder_pallas.1} parent=5 // pred_check_branch
        %127 = sbr.rel (%p124) target = $region12
      $region11: #{temporal_encoder_pallas.1} parent=5 // pred_region
        %s128 = ssub.s32 %s18, 1
      $region12: #{temporal_encoder_pallas.1} parent=5 // pred_fallthru
        _
      %p129 = scmp.lt.s32.totalorder %s18, 16
      // Predicated region
      $region13: #{temporal_encoder_pallas.1} parent=5 // pred_check
        %p130 = pneg %p129
      $region14: #{temporal_encoder_pallas.1} parent=5 // pred_check_branch
        %132 = sbr.rel (%p130) target = $region16
      $region15: #{temporal_encoder_pallas.1} parent=5 // pred_region
        // Predicated region
        $region17: #{temporal_encoder_pallas.1} parent=15 // pred_check
          %p133 = pneg %p52
        $region18: #{temporal_encoder_pallas.1} parent=15 // pred_check_branch
          %135 = sbr.rel (%p133) target = $region20
        $region19: #{temporal_encoder_pallas.1} parent=15 // pred_region
          #allocation13 [shape = 'u32[6]{0}', space=smem, size = 0x18, scoped, tag = 'DMA stride descriptor']
          %s136 = sand.u32 %s42, 1
          %s137 = scalar_lea.sflag [#allocation7], %s136
          %s138 = sand.u32 %s42, 1
          %s139 = smul.addr %s138, 256
          %s140 = scalar_lea.vmem [#allocation6], %s139
          %s141 = smul.u32 2, %s26
          %s142 = smul.u32 8, %s25
          %s144 = ssub.s32 4096, 4096
          %145 = vsyncadd %s137, %s144
          %s146 = smul.addr %s142, 4
          %s147 = smul.addr %s141, 64
          %s148 = sadd.s32 %s146, %s147
          %s149 = smul.addr %s148, 64
          %s150 = scalar_lea.hbm %s0, %s149
          %s152 = sshll.u32 1, 14
          %s153 = sxor.u32 4294967295, %s152
          %s155 = sld [smem:[#allocation0]]
          %s156 = sadd.s32 2, %s155
          %s158 = sshll.u32 7, 26
          %s159 = sxor.u32 4294967295, %s158
          %s160 = sand.u32 0, %s159
          %s161 = sshll.u32 %s156, 26
          %s162 = sor.u32 %s160, %s161
          %s163 = sshll.u32 %s140, 4
          %s164 = int_to_ptr.vmem [resolvable:$true] %s163
          %170 = sst [smem:[#allocation13]] 4096
          %s171 = scalar_lea.smem [#allocation13], 1
          %172 = sst [smem:[%s171]] 2048
          %s173 = scalar_lea.smem [#allocation13], 2
          %174 = sst [smem:[%s173]] 8
          %s175 = scalar_lea.smem [#allocation13], 3
          %176 = sst [smem:[%s175]] 256
          %s177 = scalar_lea.smem [#allocation13], 4
          %178 = sst [smem:[%s177]] 256
          %s179 = scalar_lea.smem [#allocation13], 5
          %180 = sst [smem:[%s179]] 16
          %182 = dma.general %s150, 4096, %s164, %s137, [#allocation12], [#allocation13], %s162, 0
        $region20: #{temporal_encoder_pallas.1} parent=15 // pred_fallthru
          _
        // Predicated region
        $region21: #{temporal_encoder_pallas.1} parent=15 // pred_check
          %p183 = pneg %p80
        $region22: #{temporal_encoder_pallas.1} parent=15 // pred_check_branch
          %185 = sbr.rel (%p183) target = $region24
        $region23: #{temporal_encoder_pallas.1} parent=15 // pred_region
          #allocation15 [shape = 'u32[6]{0}', space=smem, size = 0x18, scoped, tag = 'DMA stride descriptor']
          %s186 = sand.u32 %s70, 1
          %s187 = scalar_lea.sflag [#allocation10], %s186
          %s188 = sand.u32 %s70, 1
          %s189 = smul.addr %s188, 128
          %s190 = scalar_lea.vmem [#allocation9], %s189
          %s191 = smul.u32 2, %s26
          %s192 = smul.u32 8, %s25
          %s194 = ssub.s32 2048, 2048
          %195 = vsyncadd %s187, %s194
          %s196 = smul.addr %s191, 16
          %s197 = sadd.s32 %s192, %s196
          %s198 = smul.addr %s197, 128
          %s199 = scalar_lea.hbm %s1, %s198
          %s201 = sshll.u32 1, 14
          %s202 = sxor.u32 4294967295, %s201
          %s204 = sld [smem:[#allocation0]]
          %s205 = sadd.s32 2, %s204
          %s207 = sshll.u32 7, 26
          %s208 = sxor.u32 4294967295, %s207
          %s209 = sand.u32 0, %s208
          %s210 = sshll.u32 %s205, 26
          %s211 = sor.u32 %s209, %s210
          %s212 = sshll.u32 %s190, 4
          %s213 = int_to_ptr.vmem [resolvable:$true] %s212
          %219 = sst [smem:[#allocation15]] 2048
          %s220 = scalar_lea.smem [#allocation15], 1
          %221 = sst [smem:[%s220]] 1024
          %s222 = scalar_lea.smem [#allocation15], 2
          %223 = sst [smem:[%s222]] 8
          %s224 = scalar_lea.smem [#allocation15], 3
          %225 = sst [smem:[%s224]] 128
          %s226 = scalar_lea.smem [#allocation15], 4
          %227 = sst [smem:[%s226]] 128
          %s228 = scalar_lea.smem [#allocation15], 5
          %229 = sst [smem:[%s228]] 8
          %231 = dma.general %s199, 2048, %s213, %s187, [#allocation14], [#allocation15], %s211, 0
        $region24: #{temporal_encoder_pallas.1} parent=15 // pred_fallthru
          _
      $region16: #{temporal_encoder_pallas.1} parent=5 // pred_fallthru
        _
      %p232 = scmp.le.s32.totalorder 1, %s18
      %p233 = scmp.lt.s32.totalorder %s18, 17
      %p234 = pnand %p232, %p233
      %p235 = pneg %p234
      // Predicated region
      $region25: #{temporal_encoder_pallas.1} parent=5 // pred_check
        _
      $region26: #{temporal_encoder_pallas.1} parent=5 // pred_check_branch
        %237 = sbr.rel (%p234) target = $region28
      $region27: #{temporal_encoder_pallas.1} parent=5 // pred_region
        %s238 = ssub.s32 %s18, 1
        %s239 = sand.u32 %s45, 1
        %s240 = scalar_lea.sflag [#allocation7], %s239
        %s241 = sand.u32 %s45, 1
        %s242 = smul.addr %s241, 256
        %s243 = scalar_lea.vmem [#allocation6], %s242
        // Predicated region
        $region29: #{temporal_encoder_pallas.1} parent=27 // pred_check
          %p244 = pneg %p58
        $region30: #{temporal_encoder_pallas.1} parent=27 // pred_check_branch
          %246 = sbr.rel (%p244) target = $region32
        $region31: #{temporal_encoder_pallas.1} parent=27 // pred_region
          %247 = dma.done %s240, 4096
        $region32: #{temporal_encoder_pallas.1} parent=27 // pred_fallthru
          _
        %s248 = sand.u32 %s73, 1
        %s249 = scalar_lea.sflag [#allocation10], %s248
        %s250 = sand.u32 %s73, 1
        %s251 = smul.addr %s250, 128
        %s252 = scalar_lea.vmem [#allocation9], %s251
        // Predicated region
        $region33: #{temporal_encoder_pallas.1} parent=27 // pred_check
          %p253 = pneg %p86
        $region34: #{temporal_encoder_pallas.1} parent=27 // pred_check_branch
          %255 = sbr.rel (%p253) target = $region36
        $region35: #{temporal_encoder_pallas.1} parent=27 // pred_region
          %256 = dma.done %s249, 2048
        $region36: #{temporal_encoder_pallas.1} parent=27 // pred_fallthru
          _
        %s257 = sand.u32 %s45, 1
        %s258 = scalar_lea.sflag [#allocation7], %s257
        %s259 = sand.u32 %s45, 1
        %s260 = smul.addr %s259, 256
        %s261 = scalar_lea.vmem [#allocation6], %s260
        %p262 = pneg %p58
        %p263 = pneg %p55
        %s264 = sand.u32 %s73, 1
        %s265 = scalar_lea.sflag [#allocation10], %s264
        %s266 = sand.u32 %s73, 1
        %s267 = smul.addr %s266, 128
        %s268 = scalar_lea.vmem [#allocation9], %s267
        %p269 = pneg %p86
        %p270 = pneg %p83
        %p271 = pneg %p114
        %p272 = pneg %p111
        %s273 = sand.u32 %s101, 1
        %s274 = scalar_lea.sflag [#allocation8], %s273
        %s275 = sand.u32 %s101, 1
        %s276 = smul.addr %s275, 128
        %s277 = scalar_lea.vmem [#allocation11], %s276
        %s278 = smul.u32 2, %s28
        %s279 = smul.u32 8, %s27
        %s280 = smul.u32 2, %s28
        %s281 = smul.u32 8, %s27
        %s282 = smul.u32 2, %s28
        %s283 = smul.u32 8, %s27
        %p285 = scmp.eq.s32.totalorder %s28, 0
        // Predicated region
        $region37: #{temporal_encoder_pallas.1} parent=27 // pred_check
          %p286 = pneg %p285
        $region38: #{temporal_encoder_pallas.1} parent=27 // pred_check_branch
          %288 = sbr.rel (%p286) target = $region40
        $region39: #{temporal_encoder_pallas.1} parent=27 // pred_region
          #allocation17 [shape = 'u32[9]{0}', space=smem, size = 0x24, scoped, tag = 'DMA stride descriptor']
          %s290 = sshll.u32 1, 14
          %s291 = sxor.u32 4294967295, %s290
          %s293 = sld [smem:[#allocation0]]
          %s294 = sadd.s32 2, %s293
          %s296 = sshll.u32 7, 26
          %s297 = sxor.u32 4294967295, %s296
          %s298 = sand.u32 0, %s297
          %s299 = sshll.u32 %s294, 26
          %s300 = sor.u32 %s298, %s299
          %s301 = sshll.u32 [#allocation2], 4
          %s302 = int_to_ptr.vmem [resolvable:$true] %s301
          %305 = sst [smem:[#allocation17]] 512
          %s306 = scalar_lea.smem [#allocation17], 1
          %307 = sst [smem:[%s306]] 512
          %s308 = scalar_lea.smem [#allocation17], 2
          %309 = sst [smem:[%s308]] 4
          %s310 = scalar_lea.smem [#allocation17], 3
          %311 = sst [smem:[%s310]] 64
          %s312 = scalar_lea.smem [#allocation17], 4
          %313 = sst [smem:[%s312]] 128
          %s314 = scalar_lea.smem [#allocation17], 5
          %315 = sst [smem:[%s314]] 2
          %s316 = scalar_lea.smem [#allocation17], 6
          %317 = sst [smem:[%s316]] 256
          %s318 = scalar_lea.smem [#allocation17], 7
          %319 = sst [smem:[%s318]] 64
          %s320 = scalar_lea.smem [#allocation17], 8
          %321 = sst [smem:[%s320]] 4
          %323 = dma.general %s2, 4096, %s302, [#allocation5], [#allocation16], [#allocation17], %s300, 0
          %324 = vst [vmem:[#allocation3] sm:$0xff] 0.0
          %325 = vst [vmem:[#allocation3 + $0x8] sm:$0xff] 0.0
          %326 = vst [vmem:[#allocation3 + $0x10] sm:$0xff] 0.0
          %327 = vst [vmem:[#allocation3 + $0x18] sm:$0xff] 0.0
          %328 = vst [vmem:[#allocation3 + $0x20] sm:$0xff] 0.0
          %329 = vst [vmem:[#allocation3 + $0x28] sm:$0xff] 0.0
          %330 = vst [vmem:[#allocation3 + $0x30] sm:$0xff] 0.0
          %331 = vst [vmem:[#allocation3 + $0x38] sm:$0xff] 0.0
          %332 = vst [vmem:[#allocation4] sm:$0xff] 0.0
          %333 = vst [vmem:[#allocation4 + $0x8] sm:$0xff] 0.0
          %334 = vst [vmem:[#allocation4 + $0x10] sm:$0xff] 0.0
          %335 = vst [vmem:[#allocation4 + $0x18] sm:$0xff] 0.0
          %336 = vst [vmem:[#allocation4 + $0x20] sm:$0xff] 0.0
          %337 = vst [vmem:[#allocation4 + $0x28] sm:$0xff] 0.0
          %338 = vst [vmem:[#allocation4 + $0x30] sm:$0xff] 0.0
          %339 = vst [vmem:[#allocation4 + $0x38] sm:$0xff] 0.0
          %s340 = smul.u32 4, 16
          %s341 = smul.u32 %s340, 4
          %s342 = sshll.u32 %s341, 4
          %343 = dma.done [#allocation5], %s342
        $region40: #{temporal_encoder_pallas.1} parent=27 // pred_fallthru
          _
        %v344 = vld [vmem:[#allocation3] sm:$0xff]
        %v345 = vld [vmem:[#allocation3 + $0x8] sm:$0xff]
        %v346 = vld [vmem:[#allocation3 + $0x10] sm:$0xff]
        %v347 = vld [vmem:[#allocation3 + $0x18] sm:$0xff]
        %v348 = vld [vmem:[#allocation3 + $0x20] sm:$0xff]
        %v349 = vld [vmem:[#allocation3 + $0x28] sm:$0xff]
        %v350 = vld [vmem:[#allocation3 + $0x30] sm:$0xff]
        %v351 = vld [vmem:[#allocation3 + $0x38] sm:$0xff]
        %v352 = vld [vmem:[#allocation4] sm:$0xff]
        %v353 = vld [vmem:[#allocation4 + $0x8] sm:$0xff]
        %v354 = vld [vmem:[#allocation4 + $0x10] sm:$0xff]
        %v355 = vld [vmem:[#allocation4 + $0x18] sm:$0xff]
        %v356 = vld [vmem:[#allocation4 + $0x20] sm:$0xff]
        %v357 = vld [vmem:[#allocation4 + $0x28] sm:$0xff]
        %v358 = vld [vmem:[#allocation4 + $0x30] sm:$0xff]
        %v359 = vld [vmem:[#allocation4 + $0x38] sm:$0xff]
        %v360 = vpack.c.bf16 %v345, %v344
        %v361 = vpack.c.bf16 %v347, %v346
        %v362 = vpack.c.bf16 %v349, %v348
        %v363 = vpack.c.bf16 %v351, %v350
        %v364 = vld [vmem:[#allocation2] sm:$0xff]
        %v365 = vld [vmem:[#allocation2 + $0x20] sm:$0xff]
        %v366 = vld [vmem:[#allocation2 + $0x40] sm:$0xff]
        %v367 = vld [vmem:[#allocation2 + $0x60] sm:$0xff]
        %v368 = vld [vmem:[#allocation2 + $0x80] sm:$0xff]
        %v369 = vld [vmem:[#allocation2 + $0xa0] sm:$0xff]
        %v370 = vld [vmem:[#allocation2 + $0xc0] sm:$0xff]
        %v371 = vld [vmem:[#allocation2 + $0xe0] sm:$0xff]
        %v372 = vld [vmem:[%s243] sm:$0xf]
        %v373 = vld [vmem:[%s243 + $0x10] sm:$0xf]
        %v374 = vld [vmem:[%s243 + $0x20] sm:$0xf]
        %v375 = vld [vmem:[%s243 + $0x30] sm:$0xf]
        %v376 = vld [vmem:[%s243 + $0x40] sm:$0xf]
        %v377 = vld [vmem:[%s243 + $0x50] sm:$0xf]
        %v378 = vld [vmem:[%s243 + $0x60] sm:$0xf]
        %v379 = vld [vmem:[%s243 + $0x70] sm:$0xf]
        %v380 = vunpack.c.l.bf16 %v372
        %v381 = vunpack.c.l.bf16 %v373
        %v382 = vunpack.c.l.bf16 %v374
        %v383 = vunpack.c.l.bf16 %v375
        %v384 = vunpack.c.l.bf16 %v376
        %v385 = vunpack.c.l.bf16 %v377
        %v386 = vunpack.c.l.bf16 %v378
        %v387 = vunpack.c.l.bf16 %v379
        %388 = vmatprep.subr.bf16.mxu0 0
        %389 = vmatpush1.bf16.msra.mxu0 %v364
        %390 = vmatprep.subr.bf16.mxu0 0
        %391 = vmatpush1.bf16.msra.mxu0 %v365
        %392 = vmatprep.subr.bf16.mxu0 0
        %393 = vmatpush1.bf16.msra.mxu0 %v366
        %394 = vmatprep.subr.bf16.mxu0 0
        %395 = vmatpush1.bf16.msra.mxu0 %v367
        %396 = vmatprep.subr.bf16.mxu0 0
        %397 = vmatpush1.bf16.msra.mxu0 %v368
        %398 = vmatprep.subr.bf16.mxu0 0
        %399 = vmatpush1.bf16.msra.mxu0 %v369
        %400 = vmatprep.subr.bf16.mxu0 0
        %401 = vmatpush1.bf16.msra.mxu0 %v370
        %402 = vmatprep.subr.bf16.mxu0 0
        %403 = vmatpush1.bf16.msra.mxu0 %v371
        %404 = vmatprep.subr.bf16.mxu0 0
        %405 = vmatpush1.bf16.msra.mxu0 0
        %406 = vmatprep.subr.bf16.mxu0 0
        %407 = vmatpush1.bf16.msra.mxu0 0
        %408 = vmatprep.subr.bf16.mxu0 0
        %409 = vmatpush1.bf16.msra.mxu0 0
        %410 = vmatprep.subr.bf16.mxu0 0
        %411 = vmatpush1.bf16.msra.mxu0 0
        %412 = vmatprep.subr.bf16.mxu0 0
        %413 = vmatpush1.bf16.msra.mxu0 0
        %414 = vmatprep.subr.bf16.mxu0 0
        %415 = vmatpush1.bf16.msra.mxu0 0
        %416 = vmatprep.subr.bf16.mxu0 0
        %417 = vmatpush1.bf16.msra.mxu0 0
        %418 = vmatprep.subr.bf16.mxu0 0
        %419 = vmatpush1.bf16.msra.mxu0 0
        %420 = vmatprep.mubr.bf16.mxu0 0
        %421 = vmatmul.mubr.bf16.gmra.mrb[0].mxu0 %v360
        %v422 = vpop.f32.mrb[0].mxu0
        %v423 = vadd.f32 %v380, %v422
        %v424 = vpop.f32.mrb[0].mxu0
        %v425 = vpop.f32.mrb[0].mxu0
        %v426 = vadd.f32 %v381, %v425
        %v427 = vpop.f32.mrb[0].mxu0
        %428 = vmatprep.mubr.bf16.mxu0 0
        %429 = vmatmul.mubr.bf16.gmra.mrb[0].mxu0 %v361
        %v430 = vpop.f32.mrb[0].mxu0
        %v431 = vadd.f32 %v382, %v430
        %v432 = vpop.f32.mrb[0].mxu0
        %v433 = vpop.f32.mrb[0].mxu0
        %v434 = vadd.f32 %v383, %v433
        %v435 = vpop.f32.mrb[0].mxu0
        %436 = vmatprep.mubr.bf16.mxu0 0
        %437 = vmatmul.mubr.bf16.gmra.mrb[0].mxu0 %v362
        %v438 = vpop.f32.mrb[0].mxu0
        %v439 = vadd.f32 %v384, %v438
        %v440 = vpop.f32.mrb[0].mxu0
        %v441 = vpop.f32.mrb[0].mxu0
        %v442 = vadd.f32 %v385, %v441
        %v443 = vpop.f32.mrb[0].mxu0
        %444 = vmatprep.mubr.bf16.mxu0 0
        %445 = vmatmul.mubr.bf16.gmra.mrb[0].mxu0 %v363
        %v446 = vpop.f32.mrb[0].mxu0
        %v447 = vadd.f32 %v386, %v446
        %v448 = vpop.f32.mrb[0].mxu0
        %v449 = vpop.f32.mrb[0].mxu0
        %v450 = vadd.f32 %v387, %v449
        %v451 = vpop.f32.mrb[0].mxu0
        %452 = vdwg.mxu0
        %v453 = vxor.u32 %v423, 2147483648
        %v454 = vxor.u32 %v426, 2147483648
        %v455 = vxor.u32 %v431, 2147483648
        %v456 = vxor.u32 %v434, 2147483648
        %v457 = vxor.u32 %v439, 2147483648
        %v458 = vxor.u32 %v442, 2147483648
        %v459 = vxor.u32 %v447, 2147483648
        %v460 = vxor.u32 %v450, 2147483648
        %v461 = vmul.f32 %v453, 1.442695
        %v462 = vpow.pop %v461
        %v463 = vmul.f32 %v454, 1.442695
        %v464 = vpow.pop %v463
        %v465 = vmul.f32 %v455, 1.442695
        %v466 = vpow.pop %v465
        %v467 = vmul.f32 %v456, 1.442695
        %v468 = vpow.pop %v467
        %v469 = vmul.f32 %v457, 1.442695
        %v470 = vpow.pop %v469
        %v471 = vmul.f32 %v458, 1.442695
        %v472 = vpow.pop %v471
        %v473 = vmul.f32 %v459, 1.442695
        %v474 = vpow.pop %v473
        %v475 = vmul.f32 %v460, 1.442695
        %v476 = vpow.pop %v475
        %v477 = vadd.f32 %v462, 1.0
        %v478 = vadd.f32 %v464, 1.0
        %v479 = vadd.f32 %v466, 1.0
        %v480 = vadd.f32 %v468, 1.0
        %v481 = vadd.f32 %v470, 1.0
        %v482 = vadd.f32 %v472, 1.0
        %v483 = vadd.f32 %v474, 1.0
        %v484 = vadd.f32 %v476, 1.0
        %v485 = vrcp.pop %v477
        %v486 = vmul.f32 1.0, %v485
        %v487 = vrcp.pop %v478
        %v488 = vmul.f32 1.0, %v487
        %v489 = vrcp.pop %v479
        %v490 = vmul.f32 1.0, %v489
        %v491 = vrcp.pop %v480
        %v492 = vmul.f32 1.0, %v491
        %v493 = vrcp.pop %v481
        %v494 = vmul.f32 1.0, %v493
        %v495 = vrcp.pop %v482
        %v496 = vmul.f32 1.0, %v495
        %v497 = vrcp.pop %v483
        %v498 = vmul.f32 1.0, %v497
        %v499 = vrcp.pop %v484
        %v500 = vmul.f32 1.0, %v499
        %v501 = vld [vmem:[#allocation2 + $0x8] sm:$0xff]
        %v502 = vld [vmem:[#allocation2 + $0x28] sm:$0xff]
        %v503 = vld [vmem:[#allocation2 + $0x48] sm:$0xff]
        %v504 = vld [vmem:[#allocation2 + $0x68] sm:$0xff]
        %v505 = vld [vmem:[#allocation2 + $0x88] sm:$0xff]
        %v506 = vld [vmem:[#allocation2 + $0xa8] sm:$0xff]
        %v507 = vld [vmem:[#allocation2 + $0xc8] sm:$0xff]
        %v508 = vld [vmem:[#allocation2 + $0xe8] sm:$0xff]
        %v509 = vld [vmem:[%s243 + $0x4] sm:$0xf]
        %v510 = vld [vmem:[%s243 + $0x14] sm:$0xf]
        %v511 = vld [vmem:[%s243 + $0x24] sm:$0xf]
        %v512 = vld [vmem:[%s243 + $0x34] sm:$0xf]
        %v513 = vld [vmem:[%s243 + $0x44] sm:$0xf]
        %v514 = vld [vmem:[%s243 + $0x54] sm:$0xf]
        %v515 = vld [vmem:[%s243 + $0x64] sm:$0xf]
        %v516 = vld [vmem:[%s243 + $0x74] sm:$0xf]
        %v517 = vunpack.c.l.bf16 %v509
        %v518 = vunpack.c.l.bf16 %v510
        %v519 = vunpack.c.l.bf16 %v511
        %v520 = vunpack.c.l.bf16 %v512
        %v521 = vunpack.c.l.bf16 %v513
        %v522 = vunpack.c.l.bf16 %v514
        %v523 = vunpack.c.l.bf16 %v515
        %v524 = vunpack.c.l.bf16 %v516
        %525 = vmatprep.subr.bf16.mxu0 0
        %526 = vmatpush1.bf16.msra.mxu0 %v501
        %527 = vmatprep.subr.bf16.mxu0 0
        %528 = vmatpush1.bf16.msra.mxu0 %v502
        %529 = vmatprep.subr.bf16.mxu0 0
        %530 = vmatpush1.bf16.msra.mxu0 %v503
        %531 = vmatprep.subr.bf16.mxu0 0
        %532 = vmatpush1.bf16.msra.mxu0 %v504
        %533 = vmatprep.subr.bf16.mxu0 0
        %534 = vmatpush1.bf16.msra.mxu0 %v505
        %535 = vmatprep.subr.bf16.mxu0 0
        %536 = vmatpush1.bf16.msra.mxu0 %v506
        %537 = vmatprep.subr.bf16.mxu0 0
        %538 = vmatpush1.bf16.msra.mxu0 %v507
        %539 = vmatprep.subr.bf16.mxu0 0
        %540 = vmatpush1.bf16.msra.mxu0 %v508
        %541 = vmatprep.subr.bf16.mxu0 0
        %542 = vmatpush1.bf16.msra.mxu0 0
        %543 = vmatprep.subr.bf16.mxu0 0
        %544 = vmatpush1.bf16.msra.mxu0 0
        %545 = vmatprep.subr.bf16.mxu0 0
        %546 = vmatpush1.bf16.msra.mxu0 0
        %547 = vmatprep.subr.bf16.mxu0 0
        %548 = vmatpush1.bf16.msra.mxu0 0
        %549 = vmatprep.subr.bf16.mxu0 0
        %550 = vmatpush1.bf16.msra.mxu0 0
        %551 = vmatprep.subr.bf16.mxu0 0
        %552 = vmatpush1.bf16.msra.mxu0 0
        %553 = vmatprep.subr.bf16.mxu0 0
        %554 = vmatpush1.bf16.msra.mxu0 0
        %555 = vmatprep.subr.bf16.mxu0 0
        %556 = vmatpush1.bf16.msra.mxu0 0
        %557 = vmatprep.mubr.bf16.mxu0 0
        %558 = vmatmul.mubr.bf16.gmra.mrb[0].mxu0 %v360
        %v559 = vpop.f32.mrb[0].mxu0
        %v560 = vadd.f32 %v517, %v559
        %v561 = vpop.f32.mrb[0].mxu0
        %v562 = vpop.f32.mrb[0].mxu0
        %v563 = vadd.f32 %v518, %v562
        %v564 = vpop.f32.mrb[0].mxu0
        %565 = vmatprep.mubr.bf16.mxu0 0
        %566 = vmatmul.mubr.bf16.gmra.mrb[0].mxu0 %v361
        %v567 = vpop.f32.mrb[0].mxu0
        %v568 = vadd.f32 %v519, %v567
        %v569 = vpop.f32.mrb[0].mxu0
        %v570 = vpop.f32.mrb[0].mxu0
        %v571 = vadd.f32 %v520, %v570
        %v572 = vpop.f32.mrb[0].mxu0
        %573 = vmatprep.mubr.bf16.mxu0 0
        %574 = vmatmul.mubr.bf16.gmra.mrb[0].mxu0 %v362
        %v575 = vpop.f32.mrb[0].mxu0
        %v576 = vadd.f32 %v521, %v575
        %v577 = vpop.f32.mrb[0].mxu0
        %v578 = vpop.f32.mrb[0].mxu0
        %v579 = vadd.f32 %v522, %v578
        %v580 = vpop.f32.mrb[0].mxu0
        %581 = vmatprep.mubr.bf16.mxu0 0
        %582 = vmatmul.mubr.bf16.gmra.mrb[0].mxu0 %v363
        %v583 = vpop.f32.mrb[0].mxu0
        %v584 = vadd.f32 %v523, %v583
        %v585 = vpop.f32.mrb[0].mxu0
        %v586 = vpop.f32.mrb[0].mxu0
        %v587 = vadd.f32 %v524, %v586
        %v588 = vpop.f32.mrb[0].mxu0
        %589 = vdwg.mxu0
        %v590 = vxor.u32 %v560, 2147483648
        %v591 = vxor.u32 %v563, 2147483648
        %v592 = vxor.u32 %v568, 2147483648
        %v593 = vxor.u32 %v571, 2147483648
        %v594 = vxor.u32 %v576, 2147483648
        %v595 = vxor.u32 %v579, 2147483648
        %v596 = vxor.u32 %v584, 2147483648
        %v597 = vxor.u32 %v587, 2147483648
        %v598 = vmul.f32 %v590, 1.442695
        %v599 = vpow.pop %v598
        %v600 = vmul.f32 %v591, 1.442695
        %v601 = vpow.pop %v600
        %v602 = vmul.f32 %v592, 1.442695
        %v603 = vpow.pop %v602
        %v604 = vmul.f32 %v593, 1.442695
        %v605 = vpow.pop %v604
        %v606 = vmul.f32 %v594, 1.442695
        %v607 = vpow.pop %v606
        %v608 = vmul.f32 %v595, 1.442695
        %v609 = vpow.pop %v608
        %v610 = vmul.f32 %v596, 1.442695
        %v611 = vpow.pop %v610
        %v612 = vmul.f32 %v597, 1.442695
        %v613 = vpow.pop %v612
        %v614 = vadd.f32 %v599, 1.0
        %v615 = vadd.f32 %v601, 1.0
        %v616 = vadd.f32 %v603, 1.0
        %v617 = vadd.f32 %v605, 1.0
        %v618 = vadd.f32 %v607, 1.0
        %v619 = vadd.f32 %v609, 1.0
        %v620 = vadd.f32 %v611, 1.0
        %v621 = vadd.f32 %v613, 1.0
        %v622 = vrcp.pop %v614
        %v623 = vmul.f32 1.0, %v622
        %v624 = vrcp.pop %v615
        %v625 = vmul.f32 1.0, %v624
        %v626 = vrcp.pop %v616
        %v627 = vmul.f32 1.0, %v626
        %v628 = vrcp.pop %v617
        %v629 = vmul.f32 1.0, %v628
        %v630 = vrcp.pop %v618
        %v631 = vmul.f32 1.0, %v630
        %v632 = vrcp.pop %v619
        %v633 = vmul.f32 1.0, %v632
        %v634 = vrcp.pop %v620
        %v635 = vmul.f32 1.0, %v634
        %v636 = vrcp.pop %v621
        %v637 = vmul.f32 1.0, %v636
        %v638 = vld [vmem:[#allocation2 + $0x10] sm:$0xff]
        %v639 = vld [vmem:[#allocation2 + $0x30] sm:$0xff]
        %v640 = vld [vmem:[#allocation2 + $0x50] sm:$0xff]
        %v641 = vld [vmem:[#allocation2 + $0x70] sm:$0xff]
        %v642 = vld [vmem:[#allocation2 + $0x90] sm:$0xff]
        %v643 = vld [vmem:[#allocation2 + $0xb0] sm:$0xff]
        %v644 = vld [vmem:[#allocation2 + $0xd0] sm:$0xff]
        %v645 = vld [vmem:[#allocation2 + $0xf0] sm:$0xff]
        %v646 = vld [vmem:[%s243 + $0x8] sm:$0xf]
        %v647 = vld [vmem:[%s243 + $0x18] sm:$0xf]
        %v648 = vld [vmem:[%s243 + $0x28] sm:$0xf]
        %v649 = vld [vmem:[%s243 + $0x38] sm:$0xf]
        %v650 = vld [vmem:[%s243 + $0x48] sm:$0xf]
        %v651 = vld [vmem:[%s243 + $0x58] sm:$0xf]
        %v652 = vld [vmem:[%s243 + $0x68] sm:$0xf]
        %v653 = vld [vmem:[%s243 + $0x78] sm:$0xf]
        %v654 = vunpack.c.l.bf16 %v646
        %v655 = vunpack.c.l.bf16 %v647
        %v656 = vunpack.c.l.bf16 %v648
        %v657 = vunpack.c.l.bf16 %v649
        %v658 = vunpack.c.l.bf16 %v650
        %v659 = vunpack.c.l.bf16 %v651
        %v660 = vunpack.c.l.bf16 %v652
        %v661 = vunpack.c.l.bf16 %v653
        %662 = vmatprep.subr.bf16.mxu0 0
        %663 = vmatpush1.bf16.msra.mxu0 %v638
        %664 = vmatprep.subr.bf16.mxu0 0
        %665 = vmatpush1.bf16.msra.mxu0 %v639
        %666 = vmatprep.subr.bf16.mxu0 0
        %667 = vmatpush1.bf16.msra.mxu0 %v640
        %668 = vmatprep.subr.bf16.mxu0 0
        %669 = vmatpush1.bf16.msra.mxu0 %v641
        %670 = vmatprep.subr.bf16.mxu0 0
        %671 = vmatpush1.bf16.msra.mxu0 %v642
        %672 = vmatprep.subr.bf16.mxu0 0
        %673 = vmatpush1.bf16.msra.mxu0 %v643
        %674 = vmatprep.subr.bf16.mxu0 0
        %675 = vmatpush1.bf16.msra.mxu0 %v644
        %676 = vmatprep.subr.bf16.mxu0 0
        %677 = vmatpush1.bf16.msra.mxu0 %v645
        %678 = vmatprep.subr.bf16.mxu0 0
        %679 = vmatpush1.bf16.msra.mxu0 0
        %680 = vmatprep.subr.bf16.mxu0 0
        %681 = vmatpush1.bf16.msra.mxu0 0
        %682 = vmatprep.subr.bf16.mxu0 0
        %683 = vmatpush1.bf16.msra.mxu0 0
        %684 = vmatprep.subr.bf16.mxu0 0
        %685 = vmatpush1.bf16.msra.mxu0 0
        %686 = vmatprep.subr.bf16.mxu0 0
        %687 = vmatpush1.bf16.msra.mxu0 0
        %688 = vmatprep.subr.bf16.mxu0 0
        %689 = vmatpush1.bf16.msra.mxu0 0
        %690 = vmatprep.subr.bf16.mxu0 0
        %691 = vmatpush1.bf16.msra.mxu0 0
        %692 = vmatprep.subr.bf16.mxu0 0
        %693 = vmatpush1.bf16.msra.mxu0 0
        %694 = vmatprep.mubr.bf16.mxu0 0
        %695 = vmatmul.mubr.bf16.gmra.mrb[0].mxu0 %v360
        %v696 = vpop.f32.mrb[0].mxu0
        %v697 = vadd.f32 %v654, %v696
        %v698 = vpop.f32.mrb[0].mxu0
        %v699 = vpop.f32.mrb[0].mxu0
        %v700 = vadd.f32 %v655, %v699
        %v701 = vpop.f32.mrb[0].mxu0
        %702 = vmatprep.mubr.bf16.mxu0 0
        %703 = vmatmul.mubr.bf16.gmra.mrb[0].mxu0 %v361
        %v704 = vpop.f32.mrb[0].mxu0
        %v705 = vadd.f32 %v656, %v704
        %v706 = vpop.f32.mrb[0].mxu0
        %v707 = vpop.f32.mrb[0].mxu0
        %v708 = vadd.f32 %v657, %v707
        %v709 = vpop.f32.mrb[0].mxu0
        %710 = vmatprep.mubr.bf16.mxu0 0
        %711 = vmatmul.mubr.bf16.gmra.mrb[0].mxu0 %v362
        %v712 = vpop.f32.mrb[0].mxu0
        %v713 = vadd.f32 %v658, %v712
        %v714 = vpop.f32.mrb[0].mxu0
        %v715 = vpop.f32.mrb[0].mxu0
        %v716 = vadd.f32 %v659, %v715
        %v717 = vpop.f32.mrb[0].mxu0
        %718 = vmatprep.mubr.bf16.mxu0 0
        %719 = vmatmul.mubr.bf16.gmra.mrb[0].mxu0 %v363
        %v720 = vpop.f32.mrb[0].mxu0
        %v721 = vadd.f32 %v660, %v720
        %v722 = vpop.f32.mrb[0].mxu0
        %v723 = vpop.f32.mrb[0].mxu0
        %v724 = vadd.f32 %v661, %v723
        %v725 = vpop.f32.mrb[0].mxu0
        %726 = vdwg.mxu0
        %v727 = vtanh.pop %v697
        %v728 = vtanh.pop %v700
        %v729 = vtanh.pop %v705
        %v730 = vtanh.pop %v708
        %v731 = vtanh.pop %v713
        %v732 = vtanh.pop %v716
        %v733 = vtanh.pop %v721
        %v734 = vtanh.pop %v724
        %v735 = vld [vmem:[#allocation2 + $0x18] sm:$0xff]
        %v736 = vld [vmem:[#allocation2 + $0x38] sm:$0xff]
        %v737 = vld [vmem:[#allocation2 + $0x58] sm:$0xff]
        %v738 = vld [vmem:[#allocation2 + $0x78] sm:$0xff]
        %v739 = vld [vmem:[#allocation2 + $0x98] sm:$0xff]
        %v740 = vld [vmem:[#allocation2 + $0xb8] sm:$0xff]
        %v741 = vld [vmem:[#allocation2 + $0xd8] sm:$0xff]
        %v742 = vld [vmem:[#allocation2 + $0xf8] sm:$0xff]
        %v743 = vld [vmem:[%s243 + $0xc] sm:$0xf]
        %v744 = vld [vmem:[%s243 + $0x1c] sm:$0xf]
        %v745 = vld [vmem:[%s243 + $0x2c] sm:$0xf]
        %v746 = vld [vmem:[%s243 + $0x3c] sm:$0xf]
        %v747 = vld [vmem:[%s243 + $0x4c] sm:$0xf]
        %v748 = vld [vmem:[%s243 + $0x5c] sm:$0xf]
        %v749 = vld [vmem:[%s243 + $0x6c] sm:$0xf]
        %v750 = vld [vmem:[%s243 + $0x7c] sm:$0xf]
        %v751 = vunpack.c.l.bf16 %v743
        %v752 = vunpack.c.l.bf16 %v744
        %v753 = vunpack.c.l.bf16 %v745
        %v754 = vunpack.c.l.bf16 %v746
        %v755 = vunpack.c.l.bf16 %v747
        %v756 = vunpack.c.l.bf16 %v748
        %v757 = vunpack.c.l.bf16 %v749
        %v758 = vunpack.c.l.bf16 %v750
        %759 = vmatprep.subr.bf16.mxu0 0
        %760 = vmatpush1.bf16.msra.mxu0 %v735
        %761 = vmatprep.subr.bf16.mxu0 0
        %762 = vmatpush1.bf16.msra.mxu0 %v736
        %763 = vmatprep.subr.bf16.mxu0 0
        %764 = vmatpush1.bf16.msra.mxu0 %v737
        %765 = vmatprep.subr.bf16.mxu0 0
        %766 = vmatpush1.bf16.msra.mxu0 %v738
        %767 = vmatprep.subr.bf16.mxu0 0
        %768 = vmatpush1.bf16.msra.mxu0 %v739
        %769 = vmatprep.subr.bf16.mxu0 0
        %770 = vmatpush1.bf16.msra.mxu0 %v740
        %771 = vmatprep.subr.bf16.mxu0 0
        %772 = vmatpush1.bf16.msra.mxu0 %v741
        %773 = vmatprep.subr.bf16.mxu0 0
        %774 = vmatpush1.bf16.msra.mxu0 %v742
        %775 = vmatprep.subr.bf16.mxu0 0
        %776 = vmatpush1.bf16.msra.mxu0 0
        %777 = vmatprep.subr.bf16.mxu0 0
        %778 = vmatpush1.bf16.msra.mxu0 0
        %779 = vmatprep.subr.bf16.mxu0 0
        %780 = vmatpush1.bf16.msra.mxu0 0
        %781 = vmatprep.subr.bf16.mxu0 0
        %782 = vmatpush1.bf16.msra.mxu0 0
        %783 = vmatprep.subr.bf16.mxu0 0
        %784 = vmatpush1.bf16.msra.mxu0 0
        %785 = vmatprep.subr.bf16.mxu0 0
        %786 = vmatpush1.bf16.msra.mxu0 0
        %787 = vmatprep.subr.bf16.mxu0 0
        %788 = vmatpush1.bf16.msra.mxu0 0
        %789 = vmatprep.subr.bf16.mxu0 0
        %790 = vmatpush1.bf16.msra.mxu0 0
        %791 = vmatprep.mubr.bf16.mxu0 0
        %792 = vmatmul.mubr.bf16.gmra.mrb[0].mxu0 %v360
        %v793 = vpop.f32.mrb[0].mxu0
        %v794 = vadd.f32 %v751, %v793
        %v795 = vpop.f32.mrb[0].mxu0
        %v796 = vpop.f32.mrb[0].mxu0
        %v797 = vadd.f32 %v752, %v796
        %v798 = vpop.f32.mrb[0].mxu0
        %799 = vmatprep.mubr.bf16.mxu0 0
        %800 = vmatmul.mubr.bf16.gmra.mrb[0].mxu0 %v361
        %v801 = vpop.f32.mrb[0].mxu0
        %v802 = vadd.f32 %v753, %v801
        %v803 = vpop.f32.mrb[0].mxu0
        %v804 = vpop.f32.mrb[0].mxu0
        %v805 = vadd.f32 %v754, %v804
        %v806 = vpop.f32.mrb[0].mxu0
        %807 = vmatprep.mubr.bf16.mxu0 0
        %808 = vmatmul.mubr.bf16.gmra.mrb[0].mxu0 %v362
        %v809 = vpop.f32.mrb[0].mxu0
        %v810 = vadd.f32 %v755, %v809
        %v811 = vpop.f32.mrb[0].mxu0
        %v812 = vpop.f32.mrb[0].mxu0
        %v813 = vadd.f32 %v756, %v812
        %v814 = vpop.f32.mrb[0].mxu0
        %815 = vmatprep.mubr.bf16.mxu0 0
        %816 = vmatmul.mubr.bf16.gmra.mrb[0].mxu0 %v363
        %v817 = vpop.f32.mrb[0].mxu0
        %v818 = vadd.f32 %v757, %v817
        %v819 = vpop.f32.mrb[0].mxu0
        %v820 = vpop.f32.mrb[0].mxu0
        %v821 = vadd.f32 %v758, %v820
        %v822 = vpop.f32.mrb[0].mxu0
        %823 = vdwg.mxu0
        %v824 = vxor.u32 %v794, 2147483648
        %v825 = vxor.u32 %v797, 2147483648
        %v826 = vxor.u32 %v802, 2147483648
        %v827 = vxor.u32 %v805, 2147483648
        %v828 = vxor.u32 %v810, 2147483648
        %v829 = vxor.u32 %v813, 2147483648
        %v830 = vxor.u32 %v818, 2147483648
        %v831 = vxor.u32 %v821, 2147483648
        %v832 = vmul.f32 %v824, 1.442695
        %v833 = vpow.pop %v832
        %v834 = vmul.f32 %v825, 1.442695
        %v835 = vpow.pop %v834
        %v836 = vmul.f32 %v826, 1.442695
        %v837 = vpow.pop %v836
        %v838 = vmul.f32 %v827, 1.442695
        %v839 = vpow.pop %v838
        %v840 = vmul.f32 %v828, 1.442695
        %v841 = vpow.pop %v840
        %v842 = vmul.f32 %v829, 1.442695
        %v843 = vpow.pop %v842
        %v844 = vmul.f32 %v830, 1.442695
        %v845 = vpow.pop %v844
        %v846 = vmul.f32 %v831, 1.442695
        %v847 = vpow.pop %v846
        %v848 = vadd.f32 %v833, 1.0
        %v849 = vadd.f32 %v835, 1.0
        %v850 = vadd.f32 %v837, 1.0
        %v851 = vadd.f32 %v839, 1.0
        %v852 = vadd.f32 %v841, 1.0
        %v853 = vadd.f32 %v843, 1.0
        %v854 = vadd.f32 %v845, 1.0
        %v855 = vadd.f32 %v847, 1.0
        %v856 = vrcp.pop %v848
        %v857 = vmul.f32 1.0, %v856
        %v858 = vrcp.pop %v849
        %v859 = vmul.f32 1.0, %v858
        %v860 = vrcp.pop %v850
        %v861 = vmul.f32 1.0, %v860
        %v862 = vrcp.pop %v851
        %v863 = vmul.f32 1.0, %v862
        %v864 = vrcp.pop %v852
        %v865 = vmul.f32 1.0, %v864
        %v866 = vrcp.pop %v853
        %v867 = vmul.f32 1.0, %v866
        %v868 = vrcp.pop %v854
        %v869 = vmul.f32 1.0, %v868
        %v870 = vrcp.pop %v855
        %v871 = vmul.f32 1.0, %v870
        %v872 = vmul.f32 %v623, %v352
        %v873 = vmul.f32 %v625, %v353
        %v874 = vmul.f32 %v627, %v354
        %v875 = vmul.f32 %v629, %v355
        %v876 = vmul.f32 %v631, %v356
        %v877 = vmul.f32 %v633, %v357
        %v878 = vmul.f32 %v635, %v358
        %v879 = vmul.f32 %v637, %v359
        %v880 = vmul.f32 %v486, %v727
        %v881 = vmul.f32 %v488, %v728
        %v882 = vmul.f32 %v490, %v729
        %v883 = vmul.f32 %v492, %v730
        %v884 = vmul.f32 %v494, %v731
        %v885 = vmul.f32 %v496, %v732
        %v886 = vmul.f32 %v498, %v733
        %v887 = vmul.f32 %v500, %v734
        %v888 = vadd.f32 %v872, %v880
        %v889 = vadd.f32 %v873, %v881
        %v890 = vadd.f32 %v874, %v882
        %v891 = vadd.f32 %v875, %v883
        %v892 = vadd.f32 %v876, %v884
        %v893 = vadd.f32 %v877, %v885
        %v894 = vadd.f32 %v878, %v886
        %v895 = vadd.f32 %v879, %v887
        %v896 = vtanh.pop %v888
        %v897 = vtanh.pop %v889
        %v898 = vtanh.pop %v890
        %v899 = vtanh.pop %v891
        %v900 = vtanh.pop %v892
        %v901 = vtanh.pop %v893
        %v902 = vtanh.pop %v894
        %v903 = vtanh.pop %v895
        %v904 = vmul.f32 %v857, %v896
        %v905 = vmul.f32 %v859, %v897
        %v906 = vmul.f32 %v861, %v898
        %v907 = vmul.f32 %v863, %v899
        %v908 = vmul.f32 %v865, %v900
        %v909 = vmul.f32 %v867, %v901
        %v910 = vmul.f32 %v869, %v902
        %v911 = vmul.f32 %v871, %v903
        %v912 = vld [vmem:[%s252] sm:$0xff]
        %v913 = vld [vmem:[%s252 + $0x8] sm:$0xff]
        %v914 = vld [vmem:[%s252 + $0x10] sm:$0xff]
        %v915 = vld [vmem:[%s252 + $0x18] sm:$0xff]
        %v916 = vld [vmem:[%s252 + $0x20] sm:$0xff]
        %v917 = vld [vmem:[%s252 + $0x28] sm:$0xff]
        %v918 = vld [vmem:[%s252 + $0x30] sm:$0xff]
        %v919 = vld [vmem:[%s252 + $0x38] sm:$0xff]
        %v920 = vadd.f32 %v904, %v912
        %v921 = vadd.f32 %v905, %v913
        %v922 = vadd.f32 %v906, %v914
        %v923 = vadd.f32 %v907, %v915
        %v924 = vadd.f32 %v908, %v916
        %v925 = vadd.f32 %v909, %v917
        %v926 = vadd.f32 %v910, %v918
        %v927 = vadd.f32 %v911, %v919
        %928 = vst [vmem:[%s277] sm:$0xff] %v920
        %929 = vst [vmem:[%s277 + $0x8] sm:$0xff] %v921
        %930 = vst [vmem:[%s277 + $0x10] sm:$0xff] %v922
        %931 = vst [vmem:[%s277 + $0x18] sm:$0xff] %v923
        %932 = vst [vmem:[%s277 + $0x20] sm:$0xff] %v924
        %933 = vst [vmem:[%s277 + $0x28] sm:$0xff] %v925
        %934 = vst [vmem:[%s277 + $0x30] sm:$0xff] %v926
        %935 = vst [vmem:[%s277 + $0x38] sm:$0xff] %v927
        %v936 = vpack.c.bf16 %v905, %v904
        %v937 = vpack.c.bf16 %v907, %v906
        %v938 = vpack.c.bf16 %v909, %v908
        %v939 = vpack.c.bf16 %v911, %v910
        %v940 = vld [vmem:[#allocation2] sm:$0xff]
        %v941 = vld [vmem:[#allocation2 + $0x20] sm:$0xff]
        %v942 = vld [vmem:[#allocation2 + $0x40] sm:$0xff]
        %v943 = vld [vmem:[#allocation2 + $0x60] sm:$0xff]
        %v944 = vld [vmem:[#allocation2 + $0x80] sm:$0xff]
        %v945 = vld [vmem:[#allocation2 + $0xa0] sm:$0xff]
        %v946 = vld [vmem:[#allocation2 + $0xc0] sm:$0xff]
        %v947 = vld [vmem:[#allocation2 + $0xe0] sm:$0xff]
        %s948 = scalar_lea.vmem %s243, 128 [#allocation6]
        %v949 = vld [vmem:[%s948] sm:$0xf]
        %v950 = vld [vmem:[%s948 + $0x10] sm:$0xf]
        %v951 = vld [vmem:[%s948 + $0x20] sm:$0xf]
        %v952 = vld [vmem:[%s948 + $0x30] sm:$0xf]
        %v953 = vld [vmem:[%s948 + $0x40] sm:$0xf]
        %v954 = vld [vmem:[%s948 + $0x50] sm:$0xf]
        %v955 = vld [vmem:[%s948 + $0x60] sm:$0xf]
        %v956 = vld [vmem:[%s948 + $0x70] sm:$0xf]
        %v957 = vunpack.c.l.bf16 %v949
        %v958 = vunpack.c.l.bf16 %v950
        %v959 = vunpack.c.l.bf16 %v951
        %v960 = vunpack.c.l.bf16 %v952
        %v961 = vunpack.c.l.bf16 %v953
        %v962 = vunpack.c.l.bf16 %v954
        %v963 = vunpack.c.l.bf16 %v955
        %v964 = vunpack.c.l.bf16 %v956
        %965 = vmatprep.subr.bf16.mxu0 0
        %966 = vmatpush1.bf16.msra.mxu0 %v940
        %967 = vmatprep.subr.bf16.mxu0 0
        %968 = vmatpush1.bf16.msra.mxu0 %v941
        %969 = vmatprep.subr.bf16.mxu0 0
        %970 = vmatpush1.bf16.msra.mxu0 %v942
        %971 = vmatprep.subr.bf16.mxu0 0
        %972 = vmatpush1.bf16.msra.mxu0 %v943
        %973 = vmatprep.subr.bf16.mxu0 0
        %974 = vmatpush1.bf16.msra.mxu0 %v944
        %975 = vmatprep.subr.bf16.mxu0 0
        %976 = vmatpush1.bf16.msra.mxu0 %v945
        %977 = vmatprep.subr.bf16.mxu0 0
        %978 = vmatpush1.bf16.msra.mxu0 %v946
        %979 = vmatprep.subr.bf16.mxu0 0
        %980 = vmatpush1.bf16.msra.mxu0 %v947
        %981 = vmatprep.subr.bf16.mxu0 0
        %982 = vmatpush1.bf16.msra.mxu0 0
        %983 = vmatprep.subr.bf16.mxu0 0
        %984 = vmatpush1.bf16.msra.mxu0 0
        %985 = vmatprep.subr.bf16.mxu0 0
        %986 = vmatpush1.bf16.msra.mxu0 0
        %987 = vmatprep.subr.bf16.mxu0 0
        %988 = vmatpush1.bf16.msra.mxu0 0
        %989 = vmatprep.subr.bf16.mxu0 0
        %990 = vmatpush1.bf16.msra.mxu0 0
        %991 = vmatprep.subr.bf16.mxu0 0
        %992 = vmatpush1.bf16.msra.mxu0 0
        %993 = vmatprep.subr.bf16.mxu0 0
        %994 = vmatpush1.bf16.msra.mxu0 0
        %995 = vmatprep.subr.bf16.mxu0 0
        %996 = vmatpush1.bf16.msra.mxu0 0
        %997 = vmatprep.mubr.bf16.mxu0 0
        %998 = vmatmul.mubr.bf16.gmra.mrb[0].mxu0 %v936
        %v999 = vpop.f32.mrb[0].mxu0
        %v1000 = vadd.f32 %v957, %v999
        %v1001 = vpop.f32.mrb[0].mxu0
        %v1002 = vpop.f32.mrb[0].mxu0
        %v1003 = vadd.f32 %v958, %v1002
        %v1004 = vpop.f32.mrb[0].mxu0
        %1005 = vmatprep.mubr.bf16.mxu0 0
        %1006 = vmatmul.mubr.bf16.gmra.mrb[0].mxu0 %v937
        %v1007 = vpop.f32.mrb[0].mxu0
        %v1008 = vadd.f32 %v959, %v1007
        %v1009 = vpop.f32.mrb[0].mxu0
        %v1010 = vpop.f32.mrb[0].mxu0
        %v1011 = vadd.f32 %v960, %v1010
        %v1012 = vpop.f32.mrb[0].mxu0
        %1013 = vmatprep.mubr.bf16.mxu0 0
        %1014 = vmatmul.mubr.bf16.gmra.mrb[0].mxu0 %v938
        %v1015 = vpop.f32.mrb[0].mxu0
        %v1016 = vadd.f32 %v961, %v1015
        %v1017 = vpop.f32.mrb[0].mxu0
        %v1018 = vpop.f32.mrb[0].mxu0
        %v1019 = vadd.f32 %v962, %v1018
        %v1020 = vpop.f32.mrb[0].mxu0
        %1021 = vmatprep.mubr.bf16.mxu0 0
        %1022 = vmatmul.mubr.bf16.gmra.mrb[0].mxu0 %v939
        %v1023 = vpop.f32.mrb[0].mxu0
        %v1024 = vadd.f32 %v963, %v1023
        %v1025 = vpop.f32.mrb[0].mxu0
        %v1026 = vpop.f32.mrb[0].mxu0
        %v1027 = vadd.f32 %v964, %v1026
        %v1028 = vpop.f32.mrb[0].mxu0
        %1029 = vdwg.mxu0
        %v1030 = vxor.u32 %v1000, 2147483648
        %v1031 = vxor.u32 %v1003, 2147483648
        %v1032 = vxor.u32 %v1008, 2147483648
        %v1033 = vxor.u32 %v1011, 2147483648
        %v1034 = vxor.u32 %v1016, 2147483648
        %v1035 = vxor.u32 %v1019, 2147483648
        %v1036 = vxor.u32 %v1024, 2147483648
        %v1037 = vxor.u32 %v1027, 2147483648
        %v1038 = vmul.f32 %v1030, 1.442695
        %v1039 = vpow.pop %v1038
        %v1040 = vmul.f32 %v1031, 1.442695
        %v1041 = vpow.pop %v1040
        %v1042 = vmul.f32 %v1032, 1.442695
        %v1043 = vpow.pop %v1042
        %v1044 = vmul.f32 %v1033, 1.442695
        %v1045 = vpow.pop %v1044
        %v1046 = vmul.f32 %v1034, 1.442695
        %v1047 = vpow.pop %v1046
        %v1048 = vmul.f32 %v1035, 1.442695
        %v1049 = vpow.pop %v1048
        %v1050 = vmul.f32 %v1036, 1.442695
        %v1051 = vpow.pop %v1050
        %v1052 = vmul.f32 %v1037, 1.442695
        %v1053 = vpow.pop %v1052
        %v1054 = vadd.f32 %v1039, 1.0
        %v1055 = vadd.f32 %v1041, 1.0
        %v1056 = vadd.f32 %v1043, 1.0
        %v1057 = vadd.f32 %v1045, 1.0
        %v1058 = vadd.f32 %v1047, 1.0
        %v1059 = vadd.f32 %v1049, 1.0
        %v1060 = vadd.f32 %v1051, 1.0
        %v1061 = vadd.f32 %v1053, 1.0
        %v1062 = vrcp.pop %v1054
        %v1063 = vmul.f32 1.0, %v1062
        %v1064 = vrcp.pop %v1055
        %v1065 = vmul.f32 1.0, %v1064
        %v1066 = vrcp.pop %v1056
        %v1067 = vmul.f32 1.0, %v1066
        %v1068 = vrcp.pop %v1057
        %v1069 = vmul.f32 1.0, %v1068
        %v1070 = vrcp.pop %v1058
        %v1071 = vmul.f32 1.0, %v1070
        %v1072 = vrcp.pop %v1059
        %v1073 = vmul.f32 1.0, %v1072
        %v1074 = vrcp.pop %v1060
        %v1075 = vmul.f32 1.0, %v1074
        %v1076 = vrcp.pop %v1061
        %v1077 = vmul.f32 1.0, %v1076
        %v1078 = vld [vmem:[#allocation2 + $0x8] sm:$0xff]
        %v1079 = vld [vmem:[#allocation2 + $0x28] sm:$0xff]
        %v1080 = vld [vmem:[#allocation2 + $0x48] sm:$0xff]
        %v1081 = vld [vmem:[#allocation2 + $0x68] sm:$0xff]
        %v1082 = vld [vmem:[#allocation2 + $0x88] sm:$0xff]
        %v1083 = vld [vmem:[#allocation2 + $0xa8] sm:$0xff]
        %v1084 = vld [vmem:[#allocation2 + $0xc8] sm:$0xff]
        %v1085 = vld [vmem:[#allocation2 + $0xe8] sm:$0xff]
        %v1086 = vld [vmem:[%s948 + $0x4] sm:$0xf]
        %v1087 = vld [vmem:[%s948 + $0x14] sm:$0xf]
        %v1088 = vld [vmem:[%s948 + $0x24] sm:$0xf]
        %v1089 = vld [vmem:[%s948 + $0x34] sm:$0xf]
        %v1090 = vld [vmem:[%s948 + $0x44] sm:$0xf]
        %v1091 = vld [vmem:[%s948 + $0x54] sm:$0xf]
        %v1092 = vld [vmem:[%s948 + $0x64] sm:$0xf]
        %v1093 = vld [vmem:[%s948 + $0x74] sm:$0xf]
        %v1094 = vunpack.c.l.bf16 %v1086
        %v1095 = vunpack.c.l.bf16 %v1087
        %v1096 = vunpack.c.l.bf16 %v1088
        %v1097 = vunpack.c.l.bf16 %v1089
        %v1098 = vunpack.c.l.bf16 %v1090
        %v1099 = vunpack.c.l.bf16 %v1091
        %v1100 = vunpack.c.l.bf16 %v1092
        %v1101 = vunpack.c.l.bf16 %v1093
        %1102 = vmatprep.subr.bf16.mxu0 0
        %1103 = vmatpush1.bf16.msra.mxu0 %v1078
        %1104 = vmatprep.subr.bf16.mxu0 0
        %1105 = vmatpush1.bf16.msra.mxu0 %v1079
        %1106 = vmatprep.subr.bf16.mxu0 0
        %1107 = vmatpush1.bf16.msra.mxu0 %v1080
        %1108 = vmatprep.subr.bf16.mxu0 0
        %1109 = vmatpush1.bf16.msra.mxu0 %v1081
        %1110 = vmatprep.subr.bf16.mxu0 0
        %1111 = vmatpush1.bf16.msra.mxu0 %v1082
        %1112 = vmatprep.subr.bf16.mxu0 0
        %1113 = vmatpush1.bf16.msra.mxu0 %v1083
        %1114 = vmatprep.subr.bf16.mxu0 0
        %1115 = vmatpush1.bf16.msra.mxu0 %v1084
        %1116 = vmatprep.subr.bf16.mxu0 0
        %1117 = vmatpush1.bf16.msra.mxu0 %v1085
        %1118 = vmatprep.subr.bf16.mxu0 0
        %1119 = vmatpush1.bf16.msra.mxu0 0
        %1120 = vmatprep.subr.bf16.mxu0 0
        %1121 = vmatpush1.bf16.msra.mxu0 0
        %1122 = vmatprep.subr.bf16.mxu0 0
        %1123 = vmatpush1.bf16.msra.mxu0 0
        %1124 = vmatprep.subr.bf16.mxu0 0
        %1125 = vmatpush1.bf16.msra.mxu0 0
        %1126 = vmatprep.subr.bf16.mxu0 0
        %1127 = vmatpush1.bf16.msra.mxu0 0
        %1128 = vmatprep.subr.bf16.mxu0 0
        %1129 = vmatpush1.bf16.msra.mxu0 0
        %1130 = vmatprep.subr.bf16.mxu0 0
        %1131 = vmatpush1.bf16.msra.mxu0 0
        %1132 = vmatprep.subr.bf16.mxu0 0
        %1133 = vmatpush1.bf16.msra.mxu0 0
        %1134 = vmatprep.mubr.bf16.mxu0 0
        %1135 = vmatmul.mubr.bf16.gmra.mrb[0].mxu0 %v936
        %v1136 = vpop.f32.mrb[0].mxu0
        %v1137 = vadd.f32 %v1094, %v1136
        %v1138 = vpop.f32.mrb[0].mxu0
        %v1139 = vpop.f32.mrb[0].mxu0
        %v1140 = vadd.f32 %v1095, %v1139
        %v1141 = vpop.f32.mrb[0].mxu0
        %1142 = vmatprep.mubr.bf16.mxu0 0
        %1143 = vmatmul.mubr.bf16.gmra.mrb[0].mxu0 %v937
        %v1144 = vpop.f32.mrb[0].mxu0
        %v1145 = vadd.f32 %v1096, %v1144
        %v1146 = vpop.f32.mrb[0].mxu0
        %v1147 = vpop.f32.mrb[0].mxu0
        %v1148 = vadd.f32 %v1097, %v1147
        %v1149 = vpop.f32.mrb[0].mxu0
        %1150 = vmatprep.mubr.bf16.mxu0 0
        %1151 = vmatmul.mubr.bf16.gmra.mrb[0].mxu0 %v938
        %v1152 = vpop.f32.mrb[0].mxu0
        %v1153 = vadd.f32 %v1098, %v1152
        %v1154 = vpop.f32.mrb[0].mxu0
        %v1155 = vpop.f32.mrb[0].mxu0
        %v1156 = vadd.f32 %v1099, %v1155
        %v1157 = vpop.f32.mrb[0].mxu0
        %1158 = vmatprep.mubr.bf16.mxu0 0
        %1159 = vmatmul.mubr.bf16.gmra.mrb[0].mxu0 %v939
        %v1160 = vpop.f32.mrb[0].mxu0
        %v1161 = vadd.f32 %v1100, %v1160
        %v1162 = vpop.f32.mrb[0].mxu0
        %v1163 = vpop.f32.mrb[0].mxu0
        %v1164 = vadd.f32 %v1101, %v1163
        %v1165 = vpop.f32.mrb[0].mxu0
        %1166 = vdwg.mxu0
        %v1167 = vxor.u32 %v1137, 2147483648
        %v1168 = vxor.u32 %v1140, 2147483648
        %v1169 = vxor.u32 %v1145, 2147483648
        %v1170 = vxor.u32 %v1148, 2147483648
        %v1171 = vxor.u32 %v1153, 2147483648
        %v1172 = vxor.u32 %v1156, 2147483648
        %v1173 = vxor.u32 %v1161, 2147483648
        %v1174 = vxor.u32 %v1164, 2147483648
        %v1175 = vmul.f32 %v1167, 1.442695
        %v1176 = vpow.pop %v1175
        %v1177 = vmul.f32 %v1168, 1.442695
        %v1178 = vpow.pop %v1177
        %v1179 = vmul.f32 %v1169, 1.442695
        %v1180 = vpow.pop %v1179
        %v1181 = vmul.f32 %v1170, 1.442695
        %v1182 = vpow.pop %v1181
        %v1183 = vmul.f32 %v1171, 1.442695
        %v1184 = vpow.pop %v1183
        %v1185 = vmul.f32 %v1172, 1.442695
        %v1186 = vpow.pop %v1185
        %v1187 = vmul.f32 %v1173, 1.442695
        %v1188 = vpow.pop %v1187
        %v1189 = vmul.f32 %v1174, 1.442695
        %v1190 = vpow.pop %v1189
        %v1191 = vadd.f32 %v1176, 1.0
        %v1192 = vadd.f32 %v1178, 1.0
        %v1193 = vadd.f32 %v1180, 1.0
        %v1194 = vadd.f32 %v1182, 1.0
        %v1195 = vadd.f32 %v1184, 1.0
        %v1196 = vadd.f32 %v1186, 1.0
        %v1197 = vadd.f32 %v1188, 1.0
        %v1198 = vadd.f32 %v1190, 1.0
        %v1199 = vrcp.pop %v1191
        %v1200 = vmul.f32 1.0, %v1199
        %v1201 = vrcp.pop %v1192
        %v1202 = vmul.f32 1.0, %v1201
        %v1203 = vrcp.pop %v1193
        %v1204 = vmul.f32 1.0, %v1203
        %v1205 = vrcp.pop %v1194
        %v1206 = vmul.f32 1.0, %v1205
        %v1207 = vrcp.pop %v1195
        %v1208 = vmul.f32 1.0, %v1207
        %v1209 = vrcp.pop %v1196
        %v1210 = vmul.f32 1.0, %v1209
        %v1211 = vrcp.pop %v1197
        %v1212 = vmul.f32 1.0, %v1211
        %v1213 = vrcp.pop %v1198
        %v1214 = vmul.f32 1.0, %v1213
        %v1215 = vld [vmem:[#allocation2 + $0x10] sm:$0xff]
        %v1216 = vld [vmem:[#allocation2 + $0x30] sm:$0xff]
        %v1217 = vld [vmem:[#allocation2 + $0x50] sm:$0xff]
        %v1218 = vld [vmem:[#allocation2 + $0x70] sm:$0xff]
        %v1219 = vld [vmem:[#allocation2 + $0x90] sm:$0xff]
        %v1220 = vld [vmem:[#allocation2 + $0xb0] sm:$0xff]
        %v1221 = vld [vmem:[#allocation2 + $0xd0] sm:$0xff]
        %v1222 = vld [vmem:[#allocation2 + $0xf0] sm:$0xff]
        %v1223 = vld [vmem:[%s948 + $0x8] sm:$0xf]
        %v1224 = vld [vmem:[%s948 + $0x18] sm:$0xf]
        %v1225 = vld [vmem:[%s948 + $0x28] sm:$0xf]
        %v1226 = vld [vmem:[%s948 + $0x38] sm:$0xf]
        %v1227 = vld [vmem:[%s948 + $0x48] sm:$0xf]
        %v1228 = vld [vmem:[%s948 + $0x58] sm:$0xf]
        %v1229 = vld [vmem:[%s948 + $0x68] sm:$0xf]
        %v1230 = vld [vmem:[%s948 + $0x78] sm:$0xf]
        %v1231 = vunpack.c.l.bf16 %v1223
        %v1232 = vunpack.c.l.bf16 %v1224
        %v1233 = vunpack.c.l.bf16 %v1225
        %v1234 = vunpack.c.l.bf16 %v1226
        %v1235 = vunpack.c.l.bf16 %v1227
        %v1236 = vunpack.c.l.bf16 %v1228
        %v1237 = vunpack.c.l.bf16 %v1229
        %v1238 = vunpack.c.l.bf16 %v1230
        %1239 = vmatprep.subr.bf16.mxu0 0
        %1240 = vmatpush1.bf16.msra.mxu0 %v1215
        %1241 = vmatprep.subr.bf16.mxu0 0
        %1242 = vmatpush1.bf16.msra.mxu0 %v1216
        %1243 = vmatprep.subr.bf16.mxu0 0
        %1244 = vmatpush1.bf16.msra.mxu0 %v1217
        %1245 = vmatprep.subr.bf16.mxu0 0
        %1246 = vmatpush1.bf16.msra.mxu0 %v1218
        %1247 = vmatprep.subr.bf16.mxu0 0
        %1248 = vmatpush1.bf16.msra.mxu0 %v1219
        %1249 = vmatprep.subr.bf16.mxu0 0
        %1250 = vmatpush1.bf16.msra.mxu0 %v1220
        %1251 = vmatprep.subr.bf16.mxu0 0
        %1252 = vmatpush1.bf16.msra.mxu0 %v1221
        %1253 = vmatprep.subr.bf16.mxu0 0
        %1254 = vmatpush1.bf16.msra.mxu0 %v1222
        %1255 = vmatprep.subr.bf16.mxu0 0
        %1256 = vmatpush1.bf16.msra.mxu0 0
        %1257 = vmatprep.subr.bf16.mxu0 0
        %1258 = vmatpush1.bf16.msra.mxu0 0
        %1259 = vmatprep.subr.bf16.mxu0 0
        %1260 = vmatpush1.bf16.msra.mxu0 0
        %1261 = vmatprep.subr.bf16.mxu0 0
        %1262 = vmatpush1.bf16.msra.mxu0 0
        %1263 = vmatprep.subr.bf16.mxu0 0
        %1264 = vmatpush1.bf16.msra.mxu0 0
        %1265 = vmatprep.subr.bf16.mxu0 0
        %1266 = vmatpush1.bf16.msra.mxu0 0
        %1267 = vmatprep.subr.bf16.mxu0 0
        %1268 = vmatpush1.bf16.msra.mxu0 0
        %1269 = vmatprep.subr.bf16.mxu0 0
        %1270 = vmatpush1.bf16.msra.mxu0 0
        %1271 = vmatprep.mubr.bf16.mxu0 0
        %1272 = vmatmul.mubr.bf16.gmra.mrb[0].mxu0 %v936
        %v1273 = vpop.f32.mrb[0].mxu0
        %v1274 = vadd.f32 %v1231, %v1273
        %v1275 = vpop.f32.mrb[0].mxu0
        %v1276 = vpop.f32.mrb[0].mxu0
        %v1277 = vadd.f32 %v1232, %v1276
        %v1278 = vpop.f32.mrb[0].mxu0
        %1279 = vmatprep.mubr.bf16.mxu0 0
        %1280 = vmatmul.mubr.bf16.gmra.mrb[0].mxu0 %v937
        %v1281 = vpop.f32.mrb[0].mxu0
        %v1282 = vadd.f32 %v1233, %v1281
        %v1283 = vpop.f32.mrb[0].mxu0
        %v1284 = vpop.f32.mrb[0].mxu0
        %v1285 = vadd.f32 %v1234, %v1284
        %v1286 = vpop.f32.mrb[0].mxu0
        %1287 = vmatprep.mubr.bf16.mxu0 0
        %1288 = vmatmul.mubr.bf16.gmra.mrb[0].mxu0 %v938
        %v1289 = vpop.f32.mrb[0].mxu0
        %v1290 = vadd.f32 %v1235, %v1289
        %v1291 = vpop.f32.mrb[0].mxu0
        %v1292 = vpop.f32.mrb[0].mxu0
        %v1293 = vadd.f32 %v1236, %v1292
        %v1294 = vpop.f32.mrb[0].mxu0
        %1295 = vmatprep.mubr.bf16.mxu0 0
        %1296 = vmatmul.mubr.bf16.gmra.mrb[0].mxu0 %v939
        %v1297 = vpop.f32.mrb[0].mxu0
        %v1298 = vadd.f32 %v1237, %v1297
        %v1299 = vpop.f32.mrb[0].mxu0
        %v1300 = vpop.f32.mrb[0].mxu0
        %v1301 = vadd.f32 %v1238, %v1300
        %v1302 = vpop.f32.mrb[0].mxu0
        %1303 = vdwg.mxu0
        %v1304 = vtanh.pop %v1274
        %v1305 = vtanh.pop %v1277
        %v1306 = vtanh.pop %v1282
        %v1307 = vtanh.pop %v1285
        %v1308 = vtanh.pop %v1290
        %v1309 = vtanh.pop %v1293
        %v1310 = vtanh.pop %v1298
        %v1311 = vtanh.pop %v1301
        %v1312 = vld [vmem:[#allocation2 + $0x18] sm:$0xff]
        %v1313 = vld [vmem:[#allocation2 + $0x38] sm:$0xff]
        %v1314 = vld [vmem:[#allocation2 + $0x58] sm:$0xff]
        %v1315 = vld [vmem:[#allocation2 + $0x78] sm:$0xff]
        %v1316 = vld [vmem:[#allocation2 + $0x98] sm:$0xff]
        %v1317 = vld [vmem:[#allocation2 + $0xb8] sm:$0xff]
        %v1318 = vld [vmem:[#allocation2 + $0xd8] sm:$0xff]
        %v1319 = vld [vmem:[#allocation2 + $0xf8] sm:$0xff]
        %v1320 = vld [vmem:[%s948 + $0xc] sm:$0xf]
        %v1321 = vld [vmem:[%s948 + $0x1c] sm:$0xf]
        %v1322 = vld [vmem:[%s948 + $0x2c] sm:$0xf]
        %v1323 = vld [vmem:[%s948 + $0x3c] sm:$0xf]
        %v1324 = vld [vmem:[%s948 + $0x4c] sm:$0xf]
        %v1325 = vld [vmem:[%s948 + $0x5c] sm:$0xf]
        %v1326 = vld [vmem:[%s948 + $0x6c] sm:$0xf]
        %v1327 = vld [vmem:[%s948 + $0x7c] sm:$0xf]
        %v1328 = vunpack.c.l.bf16 %v1320
        %v1329 = vunpack.c.l.bf16 %v1321
        %v1330 = vunpack.c.l.bf16 %v1322
        %v1331 = vunpack.c.l.bf16 %v1323
        %v1332 = vunpack.c.l.bf16 %v1324
        %v1333 = vunpack.c.l.bf16 %v1325
        %v1334 = vunpack.c.l.bf16 %v1326
        %v1335 = vunpack.c.l.bf16 %v1327
        %1336 = vmatprep.subr.bf16.mxu0 0
        %1337 = vmatpush1.bf16.msra.mxu0 %v1312
        %1338 = vmatprep.subr.bf16.mxu0 0
        %1339 = vmatpush1.bf16.msra.mxu0 %v1313
        %1340 = vmatprep.subr.bf16.mxu0 0
        %1341 = vmatpush1.bf16.msra.mxu0 %v1314
        %1342 = vmatprep.subr.bf16.mxu0 0
        %1343 = vmatpush1.bf16.msra.mxu0 %v1315
        %1344 = vmatprep.subr.bf16.mxu0 0
        %1345 = vmatpush1.bf16.msra.mxu0 %v1316
        %1346 = vmatprep.subr.bf16.mxu0 0
        %1347 = vmatpush1.bf16.msra.mxu0 %v1317
        %1348 = vmatprep.subr.bf16.mxu0 0
        %1349 = vmatpush1.bf16.msra.mxu0 %v1318
        %1350 = vmatprep.subr.bf16.mxu0 0
        %1351 = vmatpush1.bf16.msra.mxu0 %v1319
        %1352 = vmatprep.subr.bf16.mxu0 0
        %1353 = vmatpush1.bf16.msra.mxu0 0
        %1354 = vmatprep.subr.bf16.mxu0 0
        %1355 = vmatpush1.bf16.msra.mxu0 0
        %1356 = vmatprep.subr.bf16.mxu0 0
        %1357 = vmatpush1.bf16.msra.mxu0 0
        %1358 = vmatprep.subr.bf16.mxu0 0
        %1359 = vmatpush1.bf16.msra.mxu0 0
        %1360 = vmatprep.subr.bf16.mxu0 0
        %1361 = vmatpush1.bf16.msra.mxu0 0
        %1362 = vmatprep.subr.bf16.mxu0 0
        %1363 = vmatpush1.bf16.msra.mxu0 0
        %1364 = vmatprep.subr.bf16.mxu0 0
        %1365 = vmatpush1.bf16.msra.mxu0 0
        %1366 = vmatprep.subr.bf16.mxu0 0
        %1367 = vmatpush1.bf16.msra.mxu0 0
        %1368 = vmatprep.mubr.bf16.mxu0 0
        %1369 = vmatmul.mubr.bf16.gmra.mrb[0].mxu0 %v936
        %v1370 = vpop.f32.mrb[0].mxu0
        %v1371 = vadd.f32 %v1328, %v1370
        %v1372 = vpop.f32.mrb[0].mxu0
        %v1373 = vpop.f32.mrb[0].mxu0
        %v1374 = vadd.f32 %v1329, %v1373
        %v1375 = vpop.f32.mrb[0].mxu0
        %1376 = vmatprep.mubr.bf16.mxu0 0
        %1377 = vmatmul.mubr.bf16.gmra.mrb[0].mxu0 %v937
        %v1378 = vpop.f32.mrb[0].mxu0
        %v1379 = vadd.f32 %v1330, %v1378
        %v1380 = vpop.f32.mrb[0].mxu0
        %v1381 = vpop.f32.mrb[0].mxu0
        %v1382 = vadd.f32 %v1331, %v1381
        %v1383 = vpop.f32.mrb[0].mxu0
        %1384 = vmatprep.mubr.bf16.mxu0 0
        %1385 = vmatmul.mubr.bf16.gmra.mrb[0].mxu0 %v938
        %v1386 = vpop.f32.mrb[0].mxu0
        %v1387 = vadd.f32 %v1332, %v1386
        %v1388 = vpop.f32.mrb[0].mxu0
        %v1389 = vpop.f32.mrb[0].mxu0
        %v1390 = vadd.f32 %v1333, %v1389
        %v1391 = vpop.f32.mrb[0].mxu0
        %1392 = vmatprep.mubr.bf16.mxu0 0
        %1393 = vmatmul.mubr.bf16.gmra.mrb[0].mxu0 %v939
        %v1394 = vpop.f32.mrb[0].mxu0
        %v1395 = vadd.f32 %v1334, %v1394
        %v1396 = vpop.f32.mrb[0].mxu0
        %v1397 = vpop.f32.mrb[0].mxu0
        %v1398 = vadd.f32 %v1335, %v1397
        %v1399 = vpop.f32.mrb[0].mxu0
        %1400 = vdwg.mxu0
        %v1401 = vxor.u32 %v1371, 2147483648
        %v1402 = vxor.u32 %v1374, 2147483648
        %v1403 = vxor.u32 %v1379, 2147483648
        %v1404 = vxor.u32 %v1382, 2147483648
        %v1405 = vxor.u32 %v1387, 2147483648
        %v1406 = vxor.u32 %v1390, 2147483648
        %v1407 = vxor.u32 %v1395, 2147483648
        %v1408 = vxor.u32 %v1398, 2147483648
        %v1409 = vmul.f32 %v1401, 1.442695
        %v1410 = vpow.pop %v1409
        %v1411 = vmul.f32 %v1402, 1.442695
        %v1412 = vpow.pop %v1411
        %v1413 = vmul.f32 %v1403, 1.442695
        %v1414 = vpow.pop %v1413
        %v1415 = vmul.f32 %v1404, 1.442695
        %v1416 = vpow.pop %v1415
        %v1417 = vmul.f32 %v1405, 1.442695
        %v1418 = vpow.pop %v1417
        %v1419 = vmul.f32 %v1406, 1.442695
        %v1420 = vpow.pop %v1419
        %v1421 = vmul.f32 %v1407, 1.442695
        %v1422 = vpow.pop %v1421
        %v1423 = vmul.f32 %v1408, 1.442695
        %v1424 = vpow.pop %v1423
        %v1425 = vadd.f32 %v1410, 1.0
        %v1426 = vadd.f32 %v1412, 1.0
        %v1427 = vadd.f32 %v1414, 1.0
        %v1428 = vadd.f32 %v1416, 1.0
        %v1429 = vadd.f32 %v1418, 1.0
        %v1430 = vadd.f32 %v1420, 1.0
        %v1431 = vadd.f32 %v1422, 1.0
        %v1432 = vadd.f32 %v1424, 1.0
        %v1433 = vrcp.pop %v1425
        %v1434 = vmul.f32 1.0, %v1433
        %v1435 = vrcp.pop %v1426
        %v1436 = vmul.f32 1.0, %v1435
        %v1437 = vrcp.pop %v1427
        %v1438 = vmul.f32 1.0, %v1437
        %v1439 = vrcp.pop %v1428
        %v1440 = vmul.f32 1.0, %v1439
        %v1441 = vrcp.pop %v1429
        %v1442 = vmul.f32 1.0, %v1441
        %v1443 = vrcp.pop %v1430
        %v1444 = vmul.f32 1.0, %v1443
        %v1445 = vrcp.pop %v1431
        %v1446 = vmul.f32 1.0, %v1445
        %v1447 = vrcp.pop %v1432
        %v1448 = vmul.f32 1.0, %v1447
        %v1449 = vmul.f32 %v1200, %v888
        %v1450 = vmul.f32 %v1202, %v889
        %v1451 = vmul.f32 %v1204, %v890
        %v1452 = vmul.f32 %v1206, %v891
        %v1453 = vmul.f32 %v1208, %v892
        %v1454 = vmul.f32 %v1210, %v893
        %v1455 = vmul.f32 %v1212, %v894
        %v1456 = vmul.f32 %v1214, %v895
        %v1457 = vmul.f32 %v1063, %v1304
        %v1458 = vmul.f32 %v1065, %v1305
        %v1459 = vmul.f32 %v1067, %v1306
        %v1460 = vmul.f32 %v1069, %v1307
        %v1461 = vmul.f32 %v1071, %v1308
        %v1462 = vmul.f32 %v1073, %v1309
        %v1463 = vmul.f32 %v1075, %v1310
        %v1464 = vmul.f32 %v1077, %v1311
        %v1465 = vadd.f32 %v1449, %v1457
        %v1466 = vadd.f32 %v1450, %v1458
        %v1467 = vadd.f32 %v1451, %v1459
        %v1468 = vadd.f32 %v1452, %v1460
        %v1469 = vadd.f32 %v1453, %v1461
        %v1470 = vadd.f32 %v1454, %v1462
        %v1471 = vadd.f32 %v1455, %v1463
        %v1472 = vadd.f32 %v1456, %v1464
        %v1473 = vtanh.pop %v1465
        %v1474 = vtanh.pop %v1466
        %v1475 = vtanh.pop %v1467
        %v1476 = vtanh.pop %v1468
        %v1477 = vtanh.pop %v1469
        %v1478 = vtanh.pop %v1470
        %v1479 = vtanh.pop %v1471
        %v1480 = vtanh.pop %v1472
        %v1481 = vmul.f32 %v1434, %v1473
        %v1482 = vmul.f32 %v1436, %v1474
        %v1483 = vmul.f32 %v1438, %v1475
        %v1484 = vmul.f32 %v1440, %v1476
        %v1485 = vmul.f32 %v1442, %v1477
        %v1486 = vmul.f32 %v1444, %v1478
        %v1487 = vmul.f32 %v1446, %v1479
        %v1488 = vmul.f32 %v1448, %v1480
        %s1489 = scalar_lea.vmem %s252, 64 [#allocation9]
        %v1490 = vld [vmem:[%s1489] sm:$0xff]
        %v1491 = vld [vmem:[%s1489 + $0x8] sm:$0xff]
        %v1492 = vld [vmem:[%s1489 + $0x10] sm:$0xff]
        %v1493 = vld [vmem:[%s1489 + $0x18] sm:$0xff]
        %v1494 = vld [vmem:[%s1489 + $0x20] sm:$0xff]
        %v1495 = vld [vmem:[%s1489 + $0x28] sm:$0xff]
        %v1496 = vld [vmem:[%s1489 + $0x30] sm:$0xff]
        %v1497 = vld [vmem:[%s1489 + $0x38] sm:$0xff]
        %v1498 = vadd.f32 %v1481, %v1490
        %v1499 = vadd.f32 %v1482, %v1491
        %v1500 = vadd.f32 %v1483, %v1492
        %v1501 = vadd.f32 %v1484, %v1493
        %v1502 = vadd.f32 %v1485, %v1494
        %v1503 = vadd.f32 %v1486, %v1495
        %v1504 = vadd.f32 %v1487, %v1496
        %v1505 = vadd.f32 %v1488, %v1497
        %s1506 = scalar_lea.vmem %s277, 64 [#allocation11]
        %1507 = vst [vmem:[%s1506] sm:$0xff] %v1498
        %1508 = vst [vmem:[%s1506 + $0x8] sm:$0xff] %v1499
        %1509 = vst [vmem:[%s1506 + $0x10] sm:$0xff] %v1500
        %1510 = vst [vmem:[%s1506 + $0x18] sm:$0xff] %v1501
        %1511 = vst [vmem:[%s1506 + $0x20] sm:$0xff] %v1502
        %1512 = vst [vmem:[%s1506 + $0x28] sm:$0xff] %v1503
        %1513 = vst [vmem:[%s1506 + $0x30] sm:$0xff] %v1504
        %1514 = vst [vmem:[%s1506 + $0x38] sm:$0xff] %v1505
        %1515 = vst [vmem:[#allocation3] sm:$0xff] %v1481
        %1516 = vst [vmem:[#allocation3 + $0x8] sm:$0xff] %v1482
        %1517 = vst [vmem:[#allocation3 + $0x10] sm:$0xff] %v1483
        %1518 = vst [vmem:[#allocation3 + $0x18] sm:$0xff] %v1484
        %1519 = vst [vmem:[#allocation3 + $0x20] sm:$0xff] %v1485
        %1520 = vst [vmem:[#allocation3 + $0x28] sm:$0xff] %v1486
        %1521 = vst [vmem:[#allocation3 + $0x30] sm:$0xff] %v1487
        %1522 = vst [vmem:[#allocation3 + $0x38] sm:$0xff] %v1488
        %1523 = vst [vmem:[#allocation4] sm:$0xff] %v1465
        %1524 = vst [vmem:[#allocation4 + $0x8] sm:$0xff] %v1466
        %1525 = vst [vmem:[#allocation4 + $0x10] sm:$0xff] %v1467
        %1526 = vst [vmem:[#allocation4 + $0x18] sm:$0xff] %v1468
        %1527 = vst [vmem:[#allocation4 + $0x20] sm:$0xff] %v1469
        %1528 = vst [vmem:[#allocation4 + $0x28] sm:$0xff] %v1470
        %1529 = vst [vmem:[#allocation4 + $0x30] sm:$0xff] %v1471
        %1530 = vst [vmem:[#allocation4 + $0x38] sm:$0xff] %v1472
        %s1531 = sand.u32 %s101, 1
        %s1532 = scalar_lea.sflag [#allocation8], %s1531
        %s1533 = sand.u32 %s101, 1
        %s1534 = smul.addr %s1533, 128
        %s1535 = scalar_lea.vmem [#allocation11], %s1534
        // Predicated region
        $region41: #{temporal_encoder_pallas.1} parent=27 // pred_check
          %p1536 = pneg %p111
        $region42: #{temporal_encoder_pallas.1} parent=27 // pred_check_branch
          %1538 = sbr.rel (%p1536) target = $region44
        $region43: #{temporal_encoder_pallas.1} parent=27 // pred_region
          #allocation19 [shape = 'u32[6]{0}', space=smem, size = 0x18, scoped, tag = 'DMA stride descriptor']
          %s1539 = smul.u32 2, %s28
          %s1540 = smul.u32 8, %s27
          %s1542 = ssub.s32 2048, 2048
          %1543 = vsyncadd %s1532, %s1542
          %s1544 = smul.addr %s1539, 16
          %s1545 = sadd.s32 %s1540, %s1544
          %s1546 = smul.addr %s1545, 128
          %s1547 = scalar_lea.hbm %s3, %s1546
          %s1549 = sshll.u32 1, 14
          %s1550 = sxor.u32 4294967295, %s1549
          %s1553 = sshll.u32 7, 18
          %s1554 = sxor.u32 4294967295, %s1553
          %s1555 = sand.u32 0, %s1554
          %s1557 = sor.u32 %s1555, 0
          %s1559 = sshll.u32 3, 24
          %s1560 = sxor.u32 4294967295, %s1559
          %s1561 = sand.u32 %s1557, %s1560
          %s1563 = sor.u32 %s1561, 0
          %s1564 = sshll.u32 %s1535, 4
          %s1565 = int_to_ptr.vmem [resolvable:$true] %s1564
          %1571 = sst [smem:[#allocation19]] 1024
          %s1572 = scalar_lea.smem [#allocation19], 1
          %1573 = sst [smem:[%s1572]] 2048
          %s1574 = scalar_lea.smem [#allocation19], 2
          %1575 = sst [smem:[%s1574]] 8
          %s1576 = scalar_lea.smem [#allocation19], 3
          %1577 = sst [smem:[%s1576]] 128
          %s1578 = scalar_lea.smem [#allocation19], 4
          %1579 = sst [smem:[%s1578]] 128
          %s1580 = scalar_lea.smem [#allocation19], 5
          %1581 = sst [smem:[%s1580]] 8
          %1583 = dma.general %s1565, 2048, %s1547, %s1532, [#allocation18], [#allocation19], %s1563, 0
        $region44: #{temporal_encoder_pallas.1} parent=27 // pred_fallthru
          _
      $region28: #{temporal_encoder_pallas.1} parent=5 // pred_fallthru
        _
      %p1584 = scmp.le.s32.totalorder 2, %s18
      // Predicated region
      $region45: #{temporal_encoder_pallas.1} parent=5 // pred_check
        %p1585 = pneg %p1584
      $region46: #{temporal_encoder_pallas.1} parent=5 // pred_check_branch
        %1587 = sbr.rel (%p1585) target = $region48
      $region47: #{temporal_encoder_pallas.1} parent=5 // pred_region
        %s1588 = ssub.s32 %s18, 2
        // Predicated region
        $region49: #{temporal_encoder_pallas.1} parent=47 // pred_check
          %p1589 = pneg %p117
        $region50: #{temporal_encoder_pallas.1} parent=47 // pred_check_branch
          %1591 = sbr.rel (%p1589) target = $region52
        $region51: #{temporal_encoder_pallas.1} parent=47 // pred_region
          %s1592 = sand.u32 %s102, 1
          %s1593 = scalar_lea.sflag [#allocation8], %s1592
          %s1594 = sand.u32 %s102, 1
          %s1595 = smul.addr %s1594, 128
          %s1596 = scalar_lea.vmem [#allocation11], %s1595
          %1597 = dma.done %s1593, 2048
        $region52: #{temporal_encoder_pallas.1} parent=47 // pred_fallthru
          _
      $region48: #{temporal_encoder_pallas.1} parent=5 // pred_fallthru
        _
    $region6: #{temporal_encoder_pallas.1} parent=1 // loop_footer
      %s22 = sadd.s32 1, %s18
    $region7: #{temporal_encoder_pallas.1} parent=1 // loop_footer_branch
      %17 = sbr.rel target = $region3
    $region8: #{temporal_encoder_pallas.1} parent=1 // loop_exit
      _
    %1598 = vsyncpa [#allocation7], 1
    %s1599 = scalar_lea.sflag [#allocation7], 1
    %1600 = vsyncpa %s1599, 1
    %1601 = vsyncpa [#allocation10], 1
    %s1602 = scalar_lea.sflag [#allocation10], 1
    %1603 = vsyncpa %s1602, 1
    %1604 = vsyncpa [#allocation8], 1
    %s1605 = scalar_lea.sflag [#allocation8], 1
    %1606 = vsyncpa %s1605, 1
  %1607 = vsyncmov [#allocation5]
  %s1608 = vpop.sfrf %1607
  %p1609 = scmp.eq.s32.totalorder %s1608, 0
  %p1610 = pneg %p1609
  %1612 = shalt.err (%p1610)

</llo_original>
